<compile_context>
chip_gen: v7x
topology: tpu7x:2x2x1
jax: 0.10.0
libtpu: 0.0.40
codegen_flags: <defaults>
</compile_context>

<pallas_src>
import functools

import numpy as np

import jax
import jax.numpy as jnp
from jax import lax
from jax.experimental import pallas as pl
from jax.experimental.pallas import tpu as pltpu


def _snap_bf16(x):
    # Snap values to the bf16 grid (kept as fp32 on the host side).
    return jnp.asarray(x, jnp.bfloat16).astype(jnp.float32)


def _round_up(x, m):
    return ((x + m - 1) // m) * m


def _pack_slab(blocks, *, row_align=16, lane_align=128):
    """Pack named 2-D fp32 blocks into one bf16 slab; returns (slab, layout).

    layout[name] = (row_offset, n_rows, n_cols); every row_offset is a multiple
    of `row_align` so static slices stay tile-aligned for bf16 (16,128) tiles.
    """
    lane_width = _round_up(max(a.shape[1] for _, a in blocks), lane_align)
    layout = {}
    chunks = []
    r = 0
    for name, arr in blocks:
        arr = np.asarray(arr, np.float32)
        nr, nc = arr.shape
        padded = np.zeros((_round_up(nr, row_align), lane_width), np.float32)
        padded[:nr, :nc] = arr
        layout[name] = (r, nr, nc)
        chunks.append(padded)
        r += padded.shape[0]
    slab = np.concatenate(chunks, axis=0)
    return jnp.asarray(slab, jnp.bfloat16), layout


# ----------------------------------------------------------------------------
# Fused forward kernel: conv (folded matmul) -> fe_fc -> actor hidden -> output
# ----------------------------------------------------------------------------
def _make_actor_kernel(layout, *, hidden_names, act_dim, action_max):
    def kernel(x_ref, slab_ref, out_ref):
        def mat(name):                       # bf16 weight block (static slice)
            r0, nr, nc = layout[name]
            return slab_ref[r0:r0 + nr, 0:nc]

        def bias(name):                      # (1, nc) fp32 bias row
            r0, _, nc = layout[name]
            return slab_ref[r0:r0 + 1, 0:nc].astype(jnp.float32)

        dot = functools.partial(jnp.dot, preferred_element_type=jnp.float32)

        # conv2d(stride, pad) + ReLU + NCHW flatten, folded into one bf16 dot.
        h = jnp.maximum(dot(x_ref[...], mat("conv_w")) + bias("conv_b"), 0.0)

        # feature-extractor fc + ReLU.
        h = jnp.maximum(dot(h.astype(jnp.bfloat16), mat("fc_w")) + bias("fc_b"), 0.0)

        # actor hidden Linear + ReLU stack.
        for name in hidden_names:
            h = jnp.maximum(
                dot(h.astype(jnp.bfloat16), mat(name + "_w")) + bias(name + "_b"),
                0.0)

        # actor output: weight columns are duplicated ([W_out | W_out]) in the
        # slab, so both halves of `pre2` hold pre_act; a lane-iota select turns
        # the first act_dim lanes into tanh(pre)*action_max -> one merged store.
        pre2 = dot(h.astype(jnp.bfloat16), mat("out_w")) + bias("out_b")
        lane = lax.broadcasted_iota(jnp.int32, pre2.shape, 1)
        merged = jnp.where(lane < act_dim, jnp.tanh(pre2) * action_max, pre2)
        out_ref[...] = merged.astype(out_ref.dtype)

    return kernel


# ----------------------------------------------------------------------------
# Model: FeatureExtractor + CNNActor (forward only)
# ----------------------------------------------------------------------------
class CNNActorPallas:
    def __init__(self, key, *, obs_dim=(4, 16, 16), in_channels=4,
                 out_channels=(8,), kernel_size=3, stride=2, padding=1,
                 features_out=32, act_dim=4, hidden_sizes=(32,), action_max=1.0):
        assert len(out_channels) == 1, "only a single conv layer is supported"
        self.cin = in_channels
        self.H, self.W = obs_dim[-2:]
        self.cout = out_channels[0]
        self.k, self.s, self.p = kernel_size, stride, padding
        self.Ho = (self.H + 2 * padding - kernel_size) // stride + 1
        self.Wo = (self.W + 2 * padding - kernel_size) // stride + 1
        self.f1 = features_out
        self.act_dim = act_dim
        self.action_max = float(action_max)
        fe_flat = self.cout * self.Ho * self.Wo

        keys = jax.random.split(key, 4 + len(hidden_sizes))
        ki = iter(keys)

        def init_linear(k_, fan_in, fan_out, gain=1.0):
            kw_, kb_ = jax.random.split(k_)
            w = gain * jax.random.normal(kw_, (fan_in, fan_out), jnp.float32) / np.sqrt(fan_in)
            b = 0.01 * jax.random.normal(kb_, (1, fan_out), jnp.float32)
            return _snap_bf16(w), _snap_bf16(b)

        # FeatureExtractor conv (PyTorch OIHW layout) + bias
        self.conv_w = _snap_bf16(0.1 * jax.random.normal(
            next(ki), (self.cout, self.cin, kernel_size, kernel_size), jnp.float32))
        self.conv_b = _snap_bf16(0.01 * jax.random.normal(next(ki), (self.cout,), jnp.float32))

        # FeatureExtractor linear: fe_flat -> features_out (ReLU)
        self.fe_fc_w, self.fe_fc_b = init_linear(next(ki), fe_flat, features_out)

        # actor_head: hidden Linear+ReLU stack, then output -> act_dim
        sizes = [features_out] + list(hidden_sizes)
        self.hidden = [init_linear(next(ki), sizes[i], sizes[i + 1])
                       for i in range(len(sizes) - 1)]
        self.out_w, self.out_b = init_linear(next(ki), sizes[-1], act_dim, gain=0.01)

        self._build_slab()
        self._kernel = _make_actor_kernel(
            self.layout, hidden_names=self._hidden_names,
            act_dim=self.act_dim, action_max=self.action_max)

    # -- one-time host-side parameter fold / packing ----------------------------
    def _build_slab(self):
        k, s, p = self.k, self.s, self.p
        Cin, H, W = self.cin, self.H, self.W
        Cout, Ho, Wo = self.cout, self.Ho, self.Wo
        wc = np.asarray(self.conv_w, np.float32)          # [Cout, Cin, k, k]
        bc = np.asarray(self.conv_b, np.float32)          # [Cout]

        # Fold conv (stride/padding) + PyTorch NCHW flatten into one matrix:
        #   W_big[c*H*W + h*W + w, cout*Ho*Wo + ho*Wo + wo] = wc[cout, c, i, j]
        # with h = s*ho - p + i, w = s*wo - p + j; out-of-range (h,w) simply
        # contribute nothing, which implements the zero padding exactly.
        w_big = np.zeros((Cin * H * W, Cout * Ho * Wo), np.float32)
        for cout in range(Cout):
            for c in range(Cin):
                for i in range(k):
                    for ho in range(Ho):
                        h = s * ho - p + i
                        if not (0 <= h < H):
                            continue
                        for j in range(k):
                            for wo in range(Wo):
                                w = s * wo - p + j
                                if not (0 <= w < W):
                                    continue
                                w_big[c * H * W + h * W + w,
                                      cout * Ho * Wo + ho * Wo + wo] += wc[cout, c, i, j]
        conv_b_row = np.repeat(bc, Ho * Wo).reshape(1, Cout * Ho * Wo)

        # Output layer: duplicate columns so one dot yields [pre | pre] and a
        # lane select produces [action | pre] in a single merged store.
        out_w2 = np.concatenate([np.asarray(self.out_w)] * 2, axis=1)
        out_b2 = np.concatenate([np.asarray(self.out_b)] * 2, axis=1)

        blocks = [("conv_w", w_big), ("conv_b", conv_b_row),
                  ("fc_w", np.asarray(self.fe_fc_w)), ("fc_b", np.asarray(self.fe_fc_b))]
        self._hidden_names = []
        for li, (w_, b_) in enumerate(self.hidden):
            name = f"h{li}"
            self._hidden_names.append(name)
            blocks += [(name + "_w", np.asarray(w_)), (name + "_b", np.asarray(b_))]
        blocks += [("out_w", out_w2), ("out_b", out_b2)]

        self.slab, self.layout = _pack_slab(blocks)       # single bf16 constant

    # -- fused forward ----------------------------------------------------------
    def forward(self, obs_nchw):
        n = obs_nchw.shape[0]
        # Layout plumbing only: NCHW flatten of the tiny obs, bf16 for the MXU.
        x2d = obs_nchw.reshape(n, self.cin * self.H * self.W).astype(jnp.bfloat16)

        vmem = pltpu.MemorySpace.VMEM
        out = pl.pallas_call(
            self._kernel,
            out_shape=jax.ShapeDtypeStruct((n, 2 * self.act_dim), jnp.float32),
            in_specs=[pl.BlockSpec(memory_space=vmem),
                      pl.BlockSpec(memory_space=vmem)],
            out_specs=pl.BlockSpec(memory_space=vmem),
        )(x2d, self.slab)
        return out[:, :self.act_dim], out[:, self.act_dim:]

    # -- pure-JAX reference (same bf16-operand / f32-accumulate policy) ---------
    def forward_reference(self, obs_nchw):
        bf = jnp.bfloat16
        y = lax.conv_general_dilated(
            obs_nchw.astype(bf), self.conv_w.astype(bf),
            window_strides=(self.s, self.s),
            padding=[(self.p, self.p)] * 2,
            dimension_numbers=("NCHW", "OIHW", "NCHW"),
            preferred_element_type=jnp.float32)
        y = jnp.maximum(y + self.conv_b.reshape(1, -1, 1, 1), 0.0)
        h = y.reshape(y.shape[0], -1)                     # NCHW flatten

        def lin(a, w, b):
            return jnp.dot(a.astype(bf), w.astype(bf),
                           preferred_element_type=jnp.float32) + b

        h = jnp.maximum(lin(h, self.fe_fc_w, self.fe_fc_b), 0.0)
        for w, b in self.hidden:
            h = jnp.maximum(lin(h, w, b), 0.0)
        pre = lin(h, self.out_w, self.out_b)
        return jnp.tanh(pre) * self.action_max, pre


# ----------------------------------------------------------------------------
if __name__ == "__main__":
    key = jax.random.PRNGKey(0)
    k_model, k_obs = jax.random.split(key)

    # obs: batch=2, channels=4, spatial 16x16, NCHW (PyTorch convention).
    obs = jax.random.normal(k_obs, (2, 4, 16, 16), dtype=jnp.float32)
    obs = obs.astype(jnp.bfloat16).astype(jnp.float32)    # bf16-grid obs

    model = CNNActorPallas(k_model)
    action, pre_act = model.forward(obs)
    jax.block_until_ready((action, pre_act))

    assert action.shape == (2, 4) and pre_act.shape == (2, 4)
    assert bool(jnp.all(jnp.abs(action) <= model.action_max + 1e-6))

    # numerical cross-check against the pure-JAX reference
    act_ref, pre_ref = model.forward_reference(obs)
    np.testing.assert_allclose(np.asarray(pre_act), np.asarray(pre_ref),
                               rtol=5e-3, atol=1e-4)
    np.testing.assert_allclose(np.asarray(action), np.asarray(act_ref),
                               rtol=5e-3, atol=1e-4)

    print("KERNEL_OK")
</pallas_src>

<mosaic_0001>
module attributes {stable_mosaic.version = 11 : i64} {
  func.func @kernel(%arg0: memref<2x1024xbf16, #tpu.memory_space<vmem>>, %arg1: memref<1664x512xbf16, #tpu.memory_space<vmem>>, %arg2: memref<2x8xf32, #tpu.memory_space<vmem>>) attributes {dimension_semantics = [], scalar_prefetch = 0 : i64, scratch_operands = 0 : i64, tpu.core_type = #tpu.core_type<tc>} {
    %c0 = arith.constant 0 : index
    %c0_0 = arith.constant 0 : index
    %0 = vector.load %arg0[%c0, %c0_0] : memref<2x1024xbf16, #tpu.memory_space<vmem>>, vector<2x1024xbf16>
    %c0_1 = arith.constant 0 : index
    %c0_2 = arith.constant 0 : index
    %1 = vector.load %arg1[%c0_1, %c0_2] : memref<1664x512xbf16, #tpu.memory_space<vmem>>, vector<1024x512xbf16>
    %cst = arith.constant dense<0.000000e+00> : vector<2x512xf32>
    %2 = tpu.matmul %0, %1, %cst {dimension_numbers = #tpu.dot_dimension_numbers<[1], [0], [0], [1], [0, 0, 1, 1], [], []>} : vector<2x1024xbf16>, vector<1024x512xbf16>, vector<2x512xf32> -> vector<2x512xf32>
    %c1024 = arith.constant 1024 : index
    %c0_3 = arith.constant 0 : index
    %3 = vector.load %arg1[%c1024, %c0_3] : memref<1664x512xbf16, #tpu.memory_space<vmem>>, vector<1x512xbf16>
    %4 = arith.extf %3 : vector<1x512xbf16> to vector<1x512xf32>
    %5 = vector.broadcast %4 : vector<1x512xf32> to vector<2x512xf32>
    %6 = arith.addf %2, %5 : vector<2x512xf32>
    %cst_4 = arith.constant 0.000000e+00 : f32
    %7 = vector.broadcast %cst_4 : f32 to vector<2x512xf32>
    %8 = arith.maximumf %6, %7 : vector<2x512xf32>
    %9 = arith.truncf %8 : vector<2x512xf32> to vector<2x512xbf16>
    %c1040 = arith.constant 1040 : index
    %c0_5 = arith.constant 0 : index
    %10 = vector.load %arg1[%c1040, %c0_5] : memref<1664x512xbf16, #tpu.memory_space<vmem>>, vector<512x32xbf16>
    %cst_6 = arith.constant dense<0.000000e+00> : vector<2x32xf32>
    %11 = tpu.matmul %9, %10, %cst_6 {dimension_numbers = #tpu.dot_dimension_numbers<[1], [0], [0], [1], [0, 0, 1, 1], [], []>} : vector<2x512xbf16>, vector<512x32xbf16>, vector<2x32xf32> -> vector<2x32xf32>
    %c1552 = arith.constant 1552 : index
    %c0_7 = arith.constant 0 : index
    %12 = vector.load %arg1[%c1552, %c0_7] : memref<1664x512xbf16, #tpu.memory_space<vmem>>, vector<1x32xbf16>
    %13 = arith.extf %12 : vector<1x32xbf16> to vector<1x32xf32>
    %14 = vector.broadcast %13 : vector<1x32xf32> to vector<2x32xf32>
    %15 = arith.addf %11, %14 : vector<2x32xf32>
    %cst_8 = arith.constant 0.000000e+00 : f32
    %16 = vector.broadcast %cst_8 : f32 to vector<2x32xf32>
    %17 = arith.maximumf %15, %16 : vector<2x32xf32>
    %18 = arith.truncf %17 : vector<2x32xf32> to vector<2x32xbf16>
    %c1568 = arith.constant 1568 : index
    %c0_9 = arith.constant 0 : index
    %19 = vector.load %arg1[%c1568, %c0_9] : memref<1664x512xbf16, #tpu.memory_space<vmem>>, vector<32x32xbf16>
    %cst_10 = arith.constant dense<0.000000e+00> : vector<2x32xf32>
    %20 = tpu.matmul %18, %19, %cst_10 {dimension_numbers = #tpu.dot_dimension_numbers<[1], [0], [0], [1], [0, 0, 1, 1], [], []>} : vector<2x32xbf16>, vector<32x32xbf16>, vector<2x32xf32> -> vector<2x32xf32>
    %c1600 = arith.constant 1600 : index
    %c0_11 = arith.constant 0 : index
    %21 = vector.load %arg1[%c1600, %c0_11] : memref<1664x512xbf16, #tpu.memory_space<vmem>>, vector<1x32xbf16>
    %22 = arith.extf %21 : vector<1x32xbf16> to vector<1x32xf32>
    %23 = vector.broadcast %22 : vector<1x32xf32> to vector<2x32xf32>
    %24 = arith.addf %20, %23 : vector<2x32xf32>
    %cst_12 = arith.constant 0.000000e+00 : f32
    %25 = vector.broadcast %cst_12 : f32 to vector<2x32xf32>
    %26 = arith.maximumf %24, %25 : vector<2x32xf32>
    %27 = arith.truncf %26 : vector<2x32xf32> to vector<2x32xbf16>
    %c1616 = arith.constant 1616 : index
    %c0_13 = arith.constant 0 : index
    %28 = vector.load %arg1[%c1616, %c0_13] : memref<1664x512xbf16, #tpu.memory_space<vmem>>, vector<32x8xbf16>
    %cst_14 = arith.constant dense<0.000000e+00> : vector<2x8xf32>
    %29 = tpu.matmul %27, %28, %cst_14 {dimension_numbers = #tpu.dot_dimension_numbers<[1], [0], [0], [1], [0, 0, 1, 1], [], []>} : vector<2x32xbf16>, vector<32x8xbf16>, vector<2x8xf32> -> vector<2x8xf32>
    %c1648 = arith.constant 1648 : index
    %c0_15 = arith.constant 0 : index
    %30 = vector.load %arg1[%c1648, %c0_15] : memref<1664x512xbf16, #tpu.memory_space<vmem>>, vector<1x8xbf16>
    %31 = arith.extf %30 : vector<1x8xbf16> to vector<1x8xf32>
    %32 = vector.broadcast %31 : vector<1x8xf32> to vector<2x8xf32>
    %33 = arith.addf %29, %32 : vector<2x8xf32>
    %34 = tpu.iota {dimensions = array<i32: 1>} : vector<2x8xi32>
    %c4_i32 = arith.constant 4 : i32
    %35 = vector.broadcast %c4_i32 : i32 to vector<2x8xi32>
    %36 = arith.cmpi slt, %34, %35 : vector<2x8xi32>
    %37 = math.tanh %33 : vector<2x8xf32>
    %cst_16 = arith.constant 1.000000e+00 : f32
    %38 = vector.broadcast %cst_16 : f32 to vector<2x8xf32>
    %39 = arith.mulf %37, %38 : vector<2x8xf32>
    %40 = arith.select %36, %39, %33 : vector<2x8xi1>, vector<2x8xf32>
    %c0_17 = arith.constant 0 : index
    %c0_18 = arith.constant 0 : index
    %41 = vector.load %arg2[%c0_17, %c0_18] : memref<2x8xf32, #tpu.memory_space<vmem>>, vector<2x8xf32>
    tpu.vector_store %arg2[%c0_17, %c0_18], %40 {strides = array<i32>} : memref<2x8xf32, #tpu.memory_space<vmem>>, vector<2x8xf32>,
    return
  }
}

</mosaic_0001>

<llo_original>
// kernel: tpu_custom_call.1
$region0: #{tpu_custom_call.1}
  #allocation0 [shape = 'u32[]', space=smem, size = 0x4, offset = 0x4, fixed_abs, tag = 'smem constant byte address 0x4 - core index']
  #allocation1 [shape = 'u32[144,128]{1,0:T(1,128)}', space=vmem, size = 0x12000, scoped, tag = 'internal scratch']
  %s0 = inlined_call_operand.hbm [shape: bf16[2,1024], index: 0, kind: input, shape index: {}]
  %s1 = inlined_call_operand.hbm [shape: bf16[1664,512], index: 1, kind: input, shape index: {}]
  %s2 = inlined_call_operand.hbm [shape: f32[2,8], index: 2, kind: output, shape index: {}]
  %s3 = sld [smem:[#allocation0]]
  $region26: #{tpu_custom_call.1} parent=0
    _
  %s5 = ssub.s32 1, %s3
  %s6 = scalar_select 0, %s5, %s3
  $region1: #{tpu_custom_call.1} parent=0
    #allocation2 [shape = 'u8[4096]{0}', space=vmem, size = 0x1000, scoped, tag = 'input window, operand 0, single buffered']
    #allocation3 [shape = 's32[1]{0}', space=sflag, size = 0x4, scoped, tag = 'scoped memory for tpu_custom_call.1']
    #allocation4 [shape = 's32[1]{0}', space=sflag, size = 0x4, scoped, tag = 'scoped memory for tpu_custom_call.1']
    #allocation5 [shape = 'u8[1703936]{0}', space=vmem, size = 0x1a0000, scoped, tag = 'input window, operand 1, single buffered']
    #allocation6 [shape = 's32[1]{0}', space=sflag, size = 0x4, scoped, tag = 'scoped memory for tpu_custom_call.1']
    #allocation7 [shape = 'u8[1024]{0}', space=vmem, size = 0x400, scoped, tag = 'output window, operand 0, single buffered']
    %7 = vsyncpa [#allocation3], 0
    %8 = vsyncpa [#allocation6], 0
    %9 = vsyncpa [#allocation4], 0
    // Predicated region
    $region2: #{tpu_custom_call.1} parent=1 // pred_check
      _
    $region3: #{tpu_custom_call.1} parent=1 // pred_check_branch
      %11 = sbr.rel (0) target = $region5
    $region4: #{tpu_custom_call.1} parent=1 // pred_region
      %s13 = ssub.s32 128, 128
      %14 = vsyncadd [#allocation3], %s13
      %s16 = sshll.u32 [#allocation2], 4
      %s17 = int_to_ptr.vmem [resolvable:$true] %s16
      %19 = dma.hbm_to_vmem [thread:$0]  %s0, 128, %s17, [#allocation3]
    $region5: #{tpu_custom_call.1} parent=1 // pred_fallthru
      _
    // Predicated region
    $region6: #{tpu_custom_call.1} parent=1 // pred_check
      _
    $region7: #{tpu_custom_call.1} parent=1 // pred_check_branch
      %21 = sbr.rel (0) target = $region9
    $region8: #{tpu_custom_call.1} parent=1 // pred_region
      %s23 = ssub.s32 53248, 53248
      %24 = vsyncadd [#allocation6], %s23
      %s25 = sshll.u32 [#allocation5], 4
      %s26 = int_to_ptr.vmem [resolvable:$true] %s25
      %31 = dma.hbm_to_vmem [thread:$0]  %s1, 53248, %s26, [#allocation6], 256, 256, 16
    $region9: #{tpu_custom_call.1} parent=1 // pred_fallthru
      _
    // Predicated region
    $region10: #{tpu_custom_call.1} parent=1 // pred_check
      _
    $region11: #{tpu_custom_call.1} parent=1 // pred_check_branch
      %33 = sbr.rel (0) target = $region13
    $region12: #{tpu_custom_call.1} parent=1 // pred_region
      %34 = dma.done [#allocation3], 128
    $region13: #{tpu_custom_call.1} parent=1 // pred_fallthru
      _
    // Predicated region
    $region14: #{tpu_custom_call.1} parent=1 // pred_check
      _
    $region15: #{tpu_custom_call.1} parent=1 // pred_check_branch
      %36 = sbr.rel (0) target = $region17
    $region16: #{tpu_custom_call.1} parent=1 // pred_region
      %37 = dma.done [#allocation6], 53248
    $region17: #{tpu_custom_call.1} parent=1 // pred_fallthru
      _
    %v39 = vld [vmem:[#allocation2] sm:$0xff]
    %v40 = vld [vmem:[#allocation5] sm:$0xff]
    %v41 = vld [vmem:[#allocation5 + $0x8] sm:$0xff]
    %v42 = vld [vmem:[#allocation5 + $0x10] sm:$0xff]
    %v43 = vld [vmem:[#allocation5 + $0x18] sm:$0xff]
    %v44 = vld [vmem:[#allocation5 + $0x20] sm:$0xff]
    %v45 = vld [vmem:[#allocation5 + $0x28] sm:$0xff]
    %v46 = vld [vmem:[#allocation5 + $0x30] sm:$0xff]
    %v47 = vld [vmem:[#allocation5 + $0x38] sm:$0xff]
    %v48 = vld [vmem:[#allocation5 + $0x40] sm:$0xff]
    %v49 = vld [vmem:[#allocation5 + $0x48] sm:$0xff]
    %v50 = vld [vmem:[#allocation5 + $0x50] sm:$0xff]
    %v51 = vld [vmem:[#allocation5 + $0x58] sm:$0xff]
    %v52 = vld [vmem:[#allocation5 + $0x60] sm:$0xff]
    %v53 = vld [vmem:[#allocation5 + $0x68] sm:$0xff]
    %v54 = vld [vmem:[#allocation5 + $0x70] sm:$0xff]
    %v55 = vld [vmem:[#allocation5 + $0x78] sm:$0xff]
    %v56 = vld [vmem:[#allocation5 + $0x80] sm:$0xff]
    %v57 = vld [vmem:[#allocation5 + $0x88] sm:$0xff]
    %v58 = vld [vmem:[#allocation5 + $0x90] sm:$0xff]
    %v59 = vld [vmem:[#allocation5 + $0x98] sm:$0xff]
    %v60 = vld [vmem:[#allocation5 + $0xa0] sm:$0xff]
    %v61 = vld [vmem:[#allocation5 + $0xa8] sm:$0xff]
    %v62 = vld [vmem:[#allocation5 + $0xb0] sm:$0xff]
    %v63 = vld [vmem:[#allocation5 + $0xb8] sm:$0xff]
    %v64 = vld [vmem:[#allocation5 + $0xc0] sm:$0xff]
    %v65 = vld [vmem:[#allocation5 + $0xc8] sm:$0xff]
    %v66 = vld [vmem:[#allocation5 + $0xd0] sm:$0xff]
    %v67 = vld [vmem:[#allocation5 + $0xd8] sm:$0xff]
    %v68 = vld [vmem:[#allocation5 + $0xe0] sm:$0xff]
    %v69 = vld [vmem:[#allocation5 + $0xe8] sm:$0xff]
    %v70 = vld [vmem:[#allocation5 + $0xf0] sm:$0xff]
    %v71 = vld [vmem:[#allocation5 + $0xf8] sm:$0xff]
    %v72 = vld [vmem:[#allocation5 + $0x100] sm:$0xff]
    %v73 = vld [vmem:[#allocation5 + $0x108] sm:$0xff]
    %v74 = vld [vmem:[#allocation5 + $0x110] sm:$0xff]
    %v75 = vld [vmem:[#allocation5 + $0x118] sm:$0xff]
    %v76 = vld [vmem:[#allocation5 + $0x120] sm:$0xff]
    %v77 = vld [vmem:[#allocation5 + $0x128] sm:$0xff]
    %v78 = vld [vmem:[#allocation5 + $0x130] sm:$0xff]
    %v79 = vld [vmem:[#allocation5 + $0x138] sm:$0xff]
    %v80 = vld [vmem:[#allocation5 + $0x140] sm:$0xff]
    %v81 = vld [vmem:[#allocation5 + $0x148] sm:$0xff]
    %v82 = vld [vmem:[#allocation5 + $0x150] sm:$0xff]
    %v83 = vld [vmem:[#allocation5 + $0x158] sm:$0xff]
    %v84 = vld [vmem:[#allocation5 + $0x160] sm:$0xff]
    %v85 = vld [vmem:[#allocation5 + $0x168] sm:$0xff]
    %v86 = vld [vmem:[#allocation5 + $0x170] sm:$0xff]
    %v87 = vld [vmem:[#allocation5 + $0x178] sm:$0xff]
    %v88 = vld [vmem:[#allocation5 + $0x180] sm:$0xff]
    %v89 = vld [vmem:[#allocation5 + $0x188] sm:$0xff]
    %v90 = vld [vmem:[#allocation5 + $0x190] sm:$0xff]
    %v91 = vld [vmem:[#allocation5 + $0x198] sm:$0xff]
    %v92 = vld [vmem:[#allocation5 + $0x1a0] sm:$0xff]
    %v93 = vld [vmem:[#allocation5 + $0x1a8] sm:$0xff]
    %v94 = vld [vmem:[#allocation5 + $0x1b0] sm:$0xff]
    %v95 = vld [vmem:[#allocation5 + $0x1b8] sm:$0xff]
    %v96 = vld [vmem:[#allocation5 + $0x1c0] sm:$0xff]
    %v97 = vld [vmem:[#allocation5 + $0x1c8] sm:$0xff]
    %v98 = vld [vmem:[#allocation5 + $0x1d0] sm:$0xff]
    %v99 = vld [vmem:[#allocation5 + $0x1d8] sm:$0xff]
    %v100 = vld [vmem:[#allocation5 + $0x1e0] sm:$0xff]
    %v101 = vld [vmem:[#allocation5 + $0x1e8] sm:$0xff]
    %v102 = vld [vmem:[#allocation5 + $0x1f0] sm:$0xff]
    %v103 = vld [vmem:[#allocation5 + $0x1f8] sm:$0xff]
    %v104 = vld [vmem:[#allocation5 + $0x200] sm:$0xff]
    %v105 = vld [vmem:[#allocation5 + $0x208] sm:$0xff]
    %v106 = vld [vmem:[#allocation5 + $0x210] sm:$0xff]
    %v107 = vld [vmem:[#allocation5 + $0x218] sm:$0xff]
    %v108 = vld [vmem:[#allocation5 + $0x220] sm:$0xff]
    %v109 = vld [vmem:[#allocation5 + $0x228] sm:$0xff]
    %v110 = vld [vmem:[#allocation5 + $0x230] sm:$0xff]
    %v111 = vld [vmem:[#allocation5 + $0x238] sm:$0xff]
    %v112 = vld [vmem:[#allocation5 + $0x240] sm:$0xff]
    %v113 = vld [vmem:[#allocation5 + $0x248] sm:$0xff]
    %v114 = vld [vmem:[#allocation5 + $0x250] sm:$0xff]
    %v115 = vld [vmem:[#allocation5 + $0x258] sm:$0xff]
    %v116 = vld [vmem:[#allocation5 + $0x260] sm:$0xff]
    %v117 = vld [vmem:[#allocation5 + $0x268] sm:$0xff]
    %v118 = vld [vmem:[#allocation5 + $0x270] sm:$0xff]
    %v119 = vld [vmem:[#allocation5 + $0x278] sm:$0xff]
    %v120 = vld [vmem:[#allocation5 + $0x280] sm:$0xff]
    %v121 = vld [vmem:[#allocation5 + $0x288] sm:$0xff]
    %v122 = vld [vmem:[#allocation5 + $0x290] sm:$0xff]
    %v123 = vld [vmem:[#allocation5 + $0x298] sm:$0xff]
    %v124 = vld [vmem:[#allocation5 + $0x2a0] sm:$0xff]
    %v125 = vld [vmem:[#allocation5 + $0x2a8] sm:$0xff]
    %v126 = vld [vmem:[#allocation5 + $0x2b0] sm:$0xff]
    %v127 = vld [vmem:[#allocation5 + $0x2b8] sm:$0xff]
    %v128 = vld [vmem:[#allocation5 + $0x2c0] sm:$0xff]
    %v129 = vld [vmem:[#allocation5 + $0x2c8] sm:$0xff]
    %v130 = vld [vmem:[#allocation5 + $0x2d0] sm:$0xff]
    %v131 = vld [vmem:[#allocation5 + $0x2d8] sm:$0xff]
    %v132 = vld [vmem:[#allocation5 + $0x2e0] sm:$0xff]
    %v133 = vld [vmem:[#allocation5 + $0x2e8] sm:$0xff]
    %v134 = vld [vmem:[#allocation5 + $0x2f0] sm:$0xff]
    %v135 = vld [vmem:[#allocation5 + $0x2f8] sm:$0xff]
    %v136 = vld [vmem:[#allocation5 + $0x300] sm:$0xff]
    %v137 = vld [vmem:[#allocation5 + $0x308] sm:$0xff]
    %v138 = vld [vmem:[#allocation5 + $0x310] sm:$0xff]
    %v139 = vld [vmem:[#allocation5 + $0x318] sm:$0xff]
    %v140 = vld [vmem:[#allocation5 + $0x320] sm:$0xff]
    %v141 = vld [vmem:[#allocation5 + $0x328] sm:$0xff]
    %v142 = vld [vmem:[#allocation5 + $0x330] sm:$0xff]
    %v143 = vld [vmem:[#allocation5 + $0x338] sm:$0xff]
    %v144 = vld [vmem:[#allocation5 + $0x340] sm:$0xff]
    %v145 = vld [vmem:[#allocation5 + $0x348] sm:$0xff]
    %v146 = vld [vmem:[#allocation5 + $0x350] sm:$0xff]
    %v147 = vld [vmem:[#allocation5 + $0x358] sm:$0xff]
    %v148 = vld [vmem:[#allocation5 + $0x360] sm:$0xff]
    %v149 = vld [vmem:[#allocation5 + $0x368] sm:$0xff]
    %v150 = vld [vmem:[#allocation5 + $0x370] sm:$0xff]
    %v151 = vld [vmem:[#allocation5 + $0x378] sm:$0xff]
    %v152 = vld [vmem:[#allocation5 + $0x380] sm:$0xff]
    %v153 = vld [vmem:[#allocation5 + $0x388] sm:$0xff]
    %v154 = vld [vmem:[#allocation5 + $0x390] sm:$0xff]
    %v155 = vld [vmem:[#allocation5 + $0x398] sm:$0xff]
    %v156 = vld [vmem:[#allocation5 + $0x3a0] sm:$0xff]
    %v157 = vld [vmem:[#allocation5 + $0x3a8] sm:$0xff]
    %v158 = vld [vmem:[#allocation5 + $0x3b0] sm:$0xff]
    %v159 = vld [vmem:[#allocation5 + $0x3b8] sm:$0xff]
    %v160 = vld [vmem:[#allocation5 + $0x3c0] sm:$0xff]
    %v161 = vld [vmem:[#allocation5 + $0x3c8] sm:$0xff]
    %v162 = vld [vmem:[#allocation5 + $0x3d0] sm:$0xff]
    %v163 = vld [vmem:[#allocation5 + $0x3d8] sm:$0xff]
    %v164 = vld [vmem:[#allocation5 + $0x3e0] sm:$0xff]
    %v165 = vld [vmem:[#allocation5 + $0x3e8] sm:$0xff]
    %v166 = vld [vmem:[#allocation5 + $0x3f0] sm:$0xff]
    %v167 = vld [vmem:[#allocation5 + $0x3f8] sm:$0xff]
    %v168 = vld [vmem:[#allocation5 + $0x400] sm:$0xff]
    %v169 = vld [vmem:[#allocation5 + $0x408] sm:$0xff]
    %v170 = vld [vmem:[#allocation5 + $0x410] sm:$0xff]
    %v171 = vld [vmem:[#allocation5 + $0x418] sm:$0xff]
    %v172 = vld [vmem:[#allocation5 + $0x420] sm:$0xff]
    %v173 = vld [vmem:[#allocation5 + $0x428] sm:$0xff]
    %v174 = vld [vmem:[#allocation5 + $0x430] sm:$0xff]
    %v175 = vld [vmem:[#allocation5 + $0x438] sm:$0xff]
    %v176 = vld [vmem:[#allocation5 + $0x440] sm:$0xff]
    %v177 = vld [vmem:[#allocation5 + $0x448] sm:$0xff]
    %v178 = vld [vmem:[#allocation5 + $0x450] sm:$0xff]
    %v179 = vld [vmem:[#allocation5 + $0x458] sm:$0xff]
    %v180 = vld [vmem:[#allocation5 + $0x460] sm:$0xff]
    %v181 = vld [vmem:[#allocation5 + $0x468] sm:$0xff]
    %v182 = vld [vmem:[#allocation5 + $0x470] sm:$0xff]
    %v183 = vld [vmem:[#allocation5 + $0x478] sm:$0xff]
    %v184 = vld [vmem:[#allocation5 + $0x480] sm:$0xff]
    %v185 = vld [vmem:[#allocation5 + $0x488] sm:$0xff]
    %v186 = vld [vmem:[#allocation5 + $0x490] sm:$0xff]
    %v187 = vld [vmem:[#allocation5 + $0x498] sm:$0xff]
    %v188 = vld [vmem:[#allocation5 + $0x4a0] sm:$0xff]
    %v189 = vld [vmem:[#allocation5 + $0x4a8] sm:$0xff]
    %v190 = vld [vmem:[#allocation5 + $0x4b0] sm:$0xff]
    %v191 = vld [vmem:[#allocation5 + $0x4b8] sm:$0xff]
    %v192 = vld [vmem:[#allocation5 + $0x4c0] sm:$0xff]
    %v193 = vld [vmem:[#allocation5 + $0x4c8] sm:$0xff]
    %v194 = vld [vmem:[#allocation5 + $0x4d0] sm:$0xff]
    %v195 = vld [vmem:[#allocation5 + $0x4d8] sm:$0xff]
    %v196 = vld [vmem:[#allocation5 + $0x4e0] sm:$0xff]
    %v197 = vld [vmem:[#allocation5 + $0x4e8] sm:$0xff]
    %v198 = vld [vmem:[#allocation5 + $0x4f0] sm:$0xff]
    %v199 = vld [vmem:[#allocation5 + $0x4f8] sm:$0xff]
    %v200 = vld [vmem:[#allocation5 + $0x500] sm:$0xff]
    %v201 = vld [vmem:[#allocation5 + $0x508] sm:$0xff]
    %v202 = vld [vmem:[#allocation5 + $0x510] sm:$0xff]
    %v203 = vld [vmem:[#allocation5 + $0x518] sm:$0xff]
    %v204 = vld [vmem:[#allocation5 + $0x520] sm:$0xff]
    %v205 = vld [vmem:[#allocation5 + $0x528] sm:$0xff]
    %v206 = vld [vmem:[#allocation5 + $0x530] sm:$0xff]
    %v207 = vld [vmem:[#allocation5 + $0x538] sm:$0xff]
    %v208 = vld [vmem:[#allocation5 + $0x540] sm:$0xff]
    %v209 = vld [vmem:[#allocation5 + $0x548] sm:$0xff]
    %v210 = vld [vmem:[#allocation5 + $0x550] sm:$0xff]
    %v211 = vld [vmem:[#allocation5 + $0x558] sm:$0xff]
    %v212 = vld [vmem:[#allocation5 + $0x560] sm:$0xff]
    %v213 = vld [vmem:[#allocation5 + $0x568] sm:$0xff]
    %v214 = vld [vmem:[#allocation5 + $0x570] sm:$0xff]
    %v215 = vld [vmem:[#allocation5 + $0x578] sm:$0xff]
    %v216 = vld [vmem:[#allocation5 + $0x580] sm:$0xff]
    %v217 = vld [vmem:[#allocation5 + $0x588] sm:$0xff]
    %v218 = vld [vmem:[#allocation5 + $0x590] sm:$0xff]
    %v219 = vld [vmem:[#allocation5 + $0x598] sm:$0xff]
    %v220 = vld [vmem:[#allocation5 + $0x5a0] sm:$0xff]
    %v221 = vld [vmem:[#allocation5 + $0x5a8] sm:$0xff]
    %v222 = vld [vmem:[#allocation5 + $0x5b0] sm:$0xff]
    %v223 = vld [vmem:[#allocation5 + $0x5b8] sm:$0xff]
    %v224 = vld [vmem:[#allocation5 + $0x5c0] sm:$0xff]
    %v225 = vld [vmem:[#allocation5 + $0x5c8] sm:$0xff]
    %v226 = vld [vmem:[#allocation5 + $0x5d0] sm:$0xff]
    %v227 = vld [vmem:[#allocation5 + $0x5d8] sm:$0xff]
    %v228 = vld [vmem:[#allocation5 + $0x5e0] sm:$0xff]
    %v229 = vld [vmem:[#allocation5 + $0x5e8] sm:$0xff]
    %v230 = vld [vmem:[#allocation5 + $0x5f0] sm:$0xff]
    %v231 = vld [vmem:[#allocation5 + $0x5f8] sm:$0xff]
    %v232 = vld [vmem:[#allocation5 + $0x600] sm:$0xff]
    %v233 = vld [vmem:[#allocation5 + $0x608] sm:$0xff]
    %v234 = vld [vmem:[#allocation5 + $0x610] sm:$0xff]
    %v235 = vld [vmem:[#allocation5 + $0x618] sm:$0xff]
    %v236 = vld [vmem:[#allocation5 + $0x620] sm:$0xff]
    %v237 = vld [vmem:[#allocation5 + $0x628] sm:$0xff]
    %v238 = vld [vmem:[#allocation5 + $0x630] sm:$0xff]
    %v239 = vld [vmem:[#allocation5 + $0x638] sm:$0xff]
    %v240 = vld [vmem:[#allocation5 + $0x640] sm:$0xff]
    %v241 = vld [vmem:[#allocation5 + $0x648] sm:$0xff]
    %v242 = vld [vmem:[#allocation5 + $0x650] sm:$0xff]
    %v243 = vld [vmem:[#allocation5 + $0x658] sm:$0xff]
    %v244 = vld [vmem:[#allocation5 + $0x660] sm:$0xff]
    %v245 = vld [vmem:[#allocation5 + $0x668] sm:$0xff]
    %v246 = vld [vmem:[#allocation5 + $0x670] sm:$0xff]
    %v247 = vld [vmem:[#allocation5 + $0x678] sm:$0xff]
    %v248 = vld [vmem:[#allocation5 + $0x680] sm:$0xff]
    %v249 = vld [vmem:[#allocation5 + $0x688] sm:$0xff]
    %v250 = vld [vmem:[#allocation5 + $0x690] sm:$0xff]
    %v251 = vld [vmem:[#allocation5 + $0x698] sm:$0xff]
    %v252 = vld [vmem:[#allocation5 + $0x6a0] sm:$0xff]
    %v253 = vld [vmem:[#allocation5 + $0x6a8] sm:$0xff]
    %v254 = vld [vmem:[#allocation5 + $0x6b0] sm:$0xff]
    %v255 = vld [vmem:[#allocation5 + $0x6b8] sm:$0xff]
    %v256 = vld [vmem:[#allocation5 + $0x6c0] sm:$0xff]
    %v257 = vld [vmem:[#allocation5 + $0x6c8] sm:$0xff]
    %v258 = vld [vmem:[#allocation5 + $0x6d0] sm:$0xff]
    %v259 = vld [vmem:[#allocation5 + $0x6d8] sm:$0xff]
    %v260 = vld [vmem:[#allocation5 + $0x6e0] sm:$0xff]
    %v261 = vld [vmem:[#allocation5 + $0x6e8] sm:$0xff]
    %v262 = vld [vmem:[#allocation5 + $0x6f0] sm:$0xff]
    %v263 = vld [vmem:[#allocation5 + $0x6f8] sm:$0xff]
    %v264 = vld [vmem:[#allocation5 + $0x700] sm:$0xff]
    %v265 = vld [vmem:[#allocation5 + $0x708] sm:$0xff]
    %v266 = vld [vmem:[#allocation5 + $0x710] sm:$0xff]
    %v267 = vld [vmem:[#allocation5 + $0x718] sm:$0xff]
    %v268 = vld [vmem:[#allocation5 + $0x720] sm:$0xff]
    %v269 = vld [vmem:[#allocation5 + $0x728] sm:$0xff]
    %v270 = vld [vmem:[#allocation5 + $0x730] sm:$0xff]
    %v271 = vld [vmem:[#allocation5 + $0x738] sm:$0xff]
    %v272 = vld [vmem:[#allocation5 + $0x740] sm:$0xff]
    %v273 = vld [vmem:[#allocation5 + $0x748] sm:$0xff]
    %v274 = vld [vmem:[#allocation5 + $0x750] sm:$0xff]
    %v275 = vld [vmem:[#allocation5 + $0x758] sm:$0xff]
    %v276 = vld [vmem:[#allocation5 + $0x760] sm:$0xff]
    %v277 = vld [vmem:[#allocation5 + $0x768] sm:$0xff]
    %v278 = vld [vmem:[#allocation5 + $0x770] sm:$0xff]
    %v279 = vld [vmem:[#allocation5 + $0x778] sm:$0xff]
    %v280 = vld [vmem:[#allocation5 + $0x780] sm:$0xff]
    %v281 = vld [vmem:[#allocation5 + $0x788] sm:$0xff]
    %v282 = vld [vmem:[#allocation5 + $0x790] sm:$0xff]
    %v283 = vld [vmem:[#allocation5 + $0x798] sm:$0xff]
    %v284 = vld [vmem:[#allocation5 + $0x7a0] sm:$0xff]
    %v285 = vld [vmem:[#allocation5 + $0x7a8] sm:$0xff]
    %v286 = vld [vmem:[#allocation5 + $0x7b0] sm:$0xff]
    %v287 = vld [vmem:[#allocation5 + $0x7b8] sm:$0xff]
    %v288 = vld [vmem:[#allocation5 + $0x7c0] sm:$0xff]
    %v289 = vld [vmem:[#allocation5 + $0x7c8] sm:$0xff]
    %v290 = vld [vmem:[#allocation5 + $0x7d0] sm:$0xff]
    %v291 = vld [vmem:[#allocation5 + $0x7d8] sm:$0xff]
    %v292 = vld [vmem:[#allocation5 + $0x7e0] sm:$0xff]
    %v293 = vld [vmem:[#allocation5 + $0x7e8] sm:$0xff]
    %v294 = vld [vmem:[#allocation5 + $0x7f0] sm:$0xff]
    %v295 = vld [vmem:[#allocation5 + $0x7f8] sm:$0xff]
    %v296 = vld [vmem:[#allocation5 + $0x800] sm:$0x11]
    %v297 = vld [vmem:[#allocation5 + $0x808] sm:$0x11]
    %v298 = vunpack.c.l.bf16 %v296
    %v299 = vunpack.c.h.bf16 %v296
    %v300 = vunpack.c.l.bf16 %v297
    %v301 = vunpack.c.h.bf16 %v297
    %v302 = vlaneseq
    %v303 = vshrl.u32 %v302, 7
    %v304 = vsub.s32 0, %v303
    %v305 = vrot.slane %v298, %v304
    %v306 = vlaneseq
    %v307 = vshrl.u32 %v306, 7
    %v308 = vsub.s32 0, %v307
    %v309 = vrot.slane %v299, %v308
    %v310 = vlaneseq
    %v311 = vshrl.u32 %v310, 7
    %v312 = vsub.s32 0, %v311
    %v313 = vrot.slane %v300, %v312
    %v314 = vlaneseq
    %v315 = vshrl.u32 %v314, 7
    %v316 = vsub.s32 0, %v315
    %v317 = vrot.slane %v301, %v316
    %v319 = vcombine.high %v39, %v39
    %v321 = vunpack.c.l.s4 1966171168
    %v322 = vunpack.c.0.s8 %v321
    %v323 = vlaneseq
    %v324 = vshrl.u32 %v323, 7
    %v325 = vsub.s32 %v322, %v324
    %v326 = vrot.slane %v39, %v325
    %v328 = vunpack.c.l.s4 1966171168
    %v329 = vunpack.c.0.s8 %v328
    %v330 = vlaneseq
    %v331 = vshrl.u32 %v330, 7
    %v332 = vsub.s32 %v329, %v331
    %v333 = vrot.slane %v319, %v332
    %v334 = vcombine.high %v326, %v326
    %v335 = vcombine.high %v333, %v333
    %v337 = vunpack.c.l.s4 1966171168
    %v338 = vunpack.c.0.s8 %v337
    %v339 = vlaneseq
    %v340 = vshrl.u32 %v339, 7
    %v341 = vsub.s32 %v338, %v340
    %v342 = vrot.slane %v326, %v341
    %v344 = vunpack.c.l.s4 1966171168
    %v345 = vunpack.c.0.s8 %v344
    %v346 = vlaneseq
    %v347 = vshrl.u32 %v346, 7
    %v348 = vsub.s32 %v345, %v347
    %v349 = vrot.slane %v333, %v348
    %v351 = vunpack.c.l.s4 1966171168
    %v352 = vunpack.c.0.s8 %v351
    %v353 = vlaneseq
    %v354 = vshrl.u32 %v353, 7
    %v355 = vsub.s32 %v352, %v354
    %v356 = vrot.slane %v334, %v355
    %v358 = vunpack.c.l.s4 1966171168
    %v359 = vunpack.c.0.s8 %v358
    %v360 = vlaneseq
    %v361 = vshrl.u32 %v360, 7
    %v362 = vsub.s32 %v359, %v361
    %v363 = vrot.slane %v335, %v362
    %v364 = vcombine.high %v342, %v342
    %v365 = vcombine.high %v349, %v349
    %v366 = vcombine.high %v356, %v356
    %v367 = vcombine.high %v363, %v363
    %v632 = vunpack.c.l.b16 %v40
    %v633 = vunpack.c.h.b16 %v40
    %v634 = vunpack.c.l.b16 %v41
    %v635 = vunpack.c.h.b16 %v41
    %v636 = vunpack.c.l.b16 %v42
    %v637 = vunpack.c.h.b16 %v42
    %v638 = vunpack.c.l.b16 %v43
    %v639 = vunpack.c.h.b16 %v43
    %v640 = vunpack.c.l.b16 %v44
    %v641 = vunpack.c.h.b16 %v44
    %v642 = vunpack.c.l.b16 %v45
    %v643 = vunpack.c.h.b16 %v45
    %v644 = vunpack.c.l.b16 %v46
    %v645 = vunpack.c.h.b16 %v46
    %v646 = vunpack.c.l.b16 %v47
    %v647 = vunpack.c.h.b16 %v47
    %v648 = vunpack.c.l.b16 %v48
    %v649 = vunpack.c.h.b16 %v48
    %v650 = vunpack.c.l.b16 %v49
    %v651 = vunpack.c.h.b16 %v49
    %v652 = vunpack.c.l.b16 %v50
    %v653 = vunpack.c.h.b16 %v50
    %v654 = vunpack.c.l.b16 %v51
    %v655 = vunpack.c.h.b16 %v51
    %v656 = vunpack.c.l.b16 %v52
    %v657 = vunpack.c.h.b16 %v52
    %v658 = vunpack.c.l.b16 %v53
    %v659 = vunpack.c.h.b16 %v53
    %v660 = vunpack.c.l.b16 %v54
    %v661 = vunpack.c.h.b16 %v54
    %v662 = vunpack.c.l.b16 %v55
    %v663 = vunpack.c.h.b16 %v55
    %v664 = vunpack.c.l.b16 %v56
    %v665 = vunpack.c.h.b16 %v56
    %v666 = vunpack.c.l.b16 %v57
    %v667 = vunpack.c.h.b16 %v57
    %v668 = vunpack.c.l.b16 %v58
    %v669 = vunpack.c.h.b16 %v58
    %v670 = vunpack.c.l.b16 %v59
    %v671 = vunpack.c.h.b16 %v59
    %v672 = vunpack.c.l.b16 %v60
    %v673 = vunpack.c.h.b16 %v60
    %v674 = vunpack.c.l.b16 %v61
    %v675 = vunpack.c.h.b16 %v61
    %v676 = vunpack.c.l.b16 %v62
    %v677 = vunpack.c.h.b16 %v62
    %v678 = vunpack.c.l.b16 %v63
    %v679 = vunpack.c.h.b16 %v63
    %v680 = vunpack.c.l.b16 %v64
    %v681 = vunpack.c.h.b16 %v64
    %v682 = vunpack.c.l.b16 %v65
    %v683 = vunpack.c.h.b16 %v65
    %v684 = vunpack.c.l.b16 %v66
    %v685 = vunpack.c.h.b16 %v66
    %v686 = vunpack.c.l.b16 %v67
    %v687 = vunpack.c.h.b16 %v67
    %v688 = vunpack.c.l.b16 %v68
    %v689 = vunpack.c.h.b16 %v68
    %v690 = vunpack.c.l.b16 %v69
    %v691 = vunpack.c.h.b16 %v69
    %v692 = vunpack.c.l.b16 %v70
    %v693 = vunpack.c.h.b16 %v70
    %v694 = vunpack.c.l.b16 %v71
    %v695 = vunpack.c.h.b16 %v71
    %v696 = vunpack.c.l.b16 %v72
    %v697 = vunpack.c.h.b16 %v72
    %v698 = vunpack.c.l.b16 %v73
    %v699 = vunpack.c.h.b16 %v73
    %v700 = vunpack.c.l.b16 %v74
    %v701 = vunpack.c.h.b16 %v74
    %v702 = vunpack.c.l.b16 %v75
    %v703 = vunpack.c.h.b16 %v75
    %v704 = vunpack.c.l.b16 %v76
    %v705 = vunpack.c.h.b16 %v76
    %v706 = vunpack.c.l.b16 %v77
    %v707 = vunpack.c.h.b16 %v77
    %v708 = vunpack.c.l.b16 %v78
    %v709 = vunpack.c.h.b16 %v78
    %v710 = vunpack.c.l.b16 %v79
    %v711 = vunpack.c.h.b16 %v79
    %v712 = vunpack.c.l.b16 %v80
    %v713 = vunpack.c.h.b16 %v80
    %v714 = vunpack.c.l.b16 %v81
    %v715 = vunpack.c.h.b16 %v81
    %v716 = vunpack.c.l.b16 %v82
    %v717 = vunpack.c.h.b16 %v82
    %v718 = vunpack.c.l.b16 %v83
    %v719 = vunpack.c.h.b16 %v83
    %v720 = vunpack.c.l.b16 %v84
    %v721 = vunpack.c.h.b16 %v84
    %v722 = vunpack.c.l.b16 %v85
    %v723 = vunpack.c.h.b16 %v85
    %v724 = vunpack.c.l.b16 %v86
    %v725 = vunpack.c.h.b16 %v86
    %v726 = vunpack.c.l.b16 %v87
    %v727 = vunpack.c.h.b16 %v87
    %v728 = vunpack.c.l.b16 %v88
    %v729 = vunpack.c.h.b16 %v88
    %v730 = vunpack.c.l.b16 %v89
    %v731 = vunpack.c.h.b16 %v89
    %v732 = vunpack.c.l.b16 %v90
    %v733 = vunpack.c.h.b16 %v90
    %v734 = vunpack.c.l.b16 %v91
    %v735 = vunpack.c.h.b16 %v91
    %v736 = vunpack.c.l.b16 %v92
    %v737 = vunpack.c.h.b16 %v92
    %v738 = vunpack.c.l.b16 %v93
    %v739 = vunpack.c.h.b16 %v93
    %v740 = vunpack.c.l.b16 %v94
    %v741 = vunpack.c.h.b16 %v94
    %v742 = vunpack.c.l.b16 %v95
    %v743 = vunpack.c.h.b16 %v95
    %v744 = vunpack.c.l.b16 %v96
    %v745 = vunpack.c.h.b16 %v96
    %v746 = vunpack.c.l.b16 %v97
    %v747 = vunpack.c.h.b16 %v97
    %v748 = vunpack.c.l.b16 %v98
    %v749 = vunpack.c.h.b16 %v98
    %v750 = vunpack.c.l.b16 %v99
    %v751 = vunpack.c.h.b16 %v99
    %v752 = vunpack.c.l.b16 %v100
    %v753 = vunpack.c.h.b16 %v100
    %v754 = vunpack.c.l.b16 %v101
    %v755 = vunpack.c.h.b16 %v101
    %v756 = vunpack.c.l.b16 %v102
    %v757 = vunpack.c.h.b16 %v102
    %v758 = vunpack.c.l.b16 %v103
    %v759 = vunpack.c.h.b16 %v103
    %v760 = vunpack.c.l.b16 %v104
    %v761 = vunpack.c.h.b16 %v104
    %v762 = vunpack.c.l.b16 %v105
    %v763 = vunpack.c.h.b16 %v105
    %v764 = vunpack.c.l.b16 %v106
    %v765 = vunpack.c.h.b16 %v106
    %v766 = vunpack.c.l.b16 %v107
    %v767 = vunpack.c.h.b16 %v107
    %v768 = vunpack.c.l.b16 %v108
    %v769 = vunpack.c.h.b16 %v108
    %v770 = vunpack.c.l.b16 %v109
    %v771 = vunpack.c.h.b16 %v109
    %v772 = vunpack.c.l.b16 %v110
    %v773 = vunpack.c.h.b16 %v110
    %v774 = vunpack.c.l.b16 %v111
    %v775 = vunpack.c.h.b16 %v111
    %v776 = vunpack.c.l.b16 %v112
    %v777 = vunpack.c.h.b16 %v112
    %v778 = vunpack.c.l.b16 %v113
    %v779 = vunpack.c.h.b16 %v113
    %v780 = vunpack.c.l.b16 %v114
    %v781 = vunpack.c.h.b16 %v114
    %v782 = vunpack.c.l.b16 %v115
    %v783 = vunpack.c.h.b16 %v115
    %v784 = vunpack.c.l.b16 %v116
    %v785 = vunpack.c.h.b16 %v116
    %v786 = vunpack.c.l.b16 %v117
    %v787 = vunpack.c.h.b16 %v117
    %v788 = vunpack.c.l.b16 %v118
    %v789 = vunpack.c.h.b16 %v118
    %v790 = vunpack.c.l.b16 %v119
    %v791 = vunpack.c.h.b16 %v119
    %v792 = vunpack.c.l.b16 %v120
    %v793 = vunpack.c.h.b16 %v120
    %v794 = vunpack.c.l.b16 %v121
    %v795 = vunpack.c.h.b16 %v121
    %v796 = vunpack.c.l.b16 %v122
    %v797 = vunpack.c.h.b16 %v122
    %v798 = vunpack.c.l.b16 %v123
    %v799 = vunpack.c.h.b16 %v123
    %v800 = vunpack.c.l.b16 %v124
    %v801 = vunpack.c.h.b16 %v124
    %v802 = vunpack.c.l.b16 %v125
    %v803 = vunpack.c.h.b16 %v125
    %v804 = vunpack.c.l.b16 %v126
    %v805 = vunpack.c.h.b16 %v126
    %v806 = vunpack.c.l.b16 %v127
    %v807 = vunpack.c.h.b16 %v127
    %v808 = vunpack.c.l.b16 %v128
    %v809 = vunpack.c.h.b16 %v128
    %v810 = vunpack.c.l.b16 %v129
    %v811 = vunpack.c.h.b16 %v129
    %v812 = vunpack.c.l.b16 %v130
    %v813 = vunpack.c.h.b16 %v130
    %v814 = vunpack.c.l.b16 %v131
    %v815 = vunpack.c.h.b16 %v131
    %v816 = vunpack.c.l.b16 %v132
    %v817 = vunpack.c.h.b16 %v132
    %v818 = vunpack.c.l.b16 %v133
    %v819 = vunpack.c.h.b16 %v133
    %v820 = vunpack.c.l.b16 %v134
    %v821 = vunpack.c.h.b16 %v134
    %v822 = vunpack.c.l.b16 %v135
    %v823 = vunpack.c.h.b16 %v135
    %v824 = vunpack.c.l.b16 %v136
    %v825 = vunpack.c.h.b16 %v136
    %v826 = vunpack.c.l.b16 %v137
    %v827 = vunpack.c.h.b16 %v137
    %v828 = vunpack.c.l.b16 %v138
    %v829 = vunpack.c.h.b16 %v138
    %v830 = vunpack.c.l.b16 %v139
    %v831 = vunpack.c.h.b16 %v139
    %v832 = vunpack.c.l.b16 %v140
    %v833 = vunpack.c.h.b16 %v140
    %v834 = vunpack.c.l.b16 %v141
    %v835 = vunpack.c.h.b16 %v141
    %v836 = vunpack.c.l.b16 %v142
    %v837 = vunpack.c.h.b16 %v142
    %v838 = vunpack.c.l.b16 %v143
    %v839 = vunpack.c.h.b16 %v143
    %v840 = vunpack.c.l.b16 %v144
    %v841 = vunpack.c.h.b16 %v144
    %v842 = vunpack.c.l.b16 %v145
    %v843 = vunpack.c.h.b16 %v145
    %v844 = vunpack.c.l.b16 %v146
    %v845 = vunpack.c.h.b16 %v146
    %v846 = vunpack.c.l.b16 %v147
    %v847 = vunpack.c.h.b16 %v147
    %v848 = vunpack.c.l.b16 %v148
    %v849 = vunpack.c.h.b16 %v148
    %v850 = vunpack.c.l.b16 %v149
    %v851 = vunpack.c.h.b16 %v149
    %v852 = vunpack.c.l.b16 %v150
    %v853 = vunpack.c.h.b16 %v150
    %v854 = vunpack.c.l.b16 %v151
    %v855 = vunpack.c.h.b16 %v151
    %v856 = vunpack.c.l.b16 %v152
    %v857 = vunpack.c.h.b16 %v152
    %v858 = vunpack.c.l.b16 %v153
    %v859 = vunpack.c.h.b16 %v153
    %v860 = vunpack.c.l.b16 %v154
    %v861 = vunpack.c.h.b16 %v154
    %v862 = vunpack.c.l.b16 %v155
    %v863 = vunpack.c.h.b16 %v155
    %v864 = vunpack.c.l.b16 %v156
    %v865 = vunpack.c.h.b16 %v156
    %v866 = vunpack.c.l.b16 %v157
    %v867 = vunpack.c.h.b16 %v157
    %v868 = vunpack.c.l.b16 %v158
    %v869 = vunpack.c.h.b16 %v158
    %v870 = vunpack.c.l.b16 %v159
    %v871 = vunpack.c.h.b16 %v159
    %v872 = vunpack.c.l.b16 %v160
    %v873 = vunpack.c.h.b16 %v160
    %v874 = vunpack.c.l.b16 %v161
    %v875 = vunpack.c.h.b16 %v161
    %v876 = vunpack.c.l.b16 %v162
    %v877 = vunpack.c.h.b16 %v162
    %v878 = vunpack.c.l.b16 %v163
    %v879 = vunpack.c.h.b16 %v163
    %v880 = vunpack.c.l.b16 %v164
    %v881 = vunpack.c.h.b16 %v164
    %v882 = vunpack.c.l.b16 %v165
    %v883 = vunpack.c.h.b16 %v165
    %v884 = vunpack.c.l.b16 %v166
    %v885 = vunpack.c.h.b16 %v166
    %v886 = vunpack.c.l.b16 %v167
    %v887 = vunpack.c.h.b16 %v167
    %v888 = vunpack.c.l.b16 %v168
    %v889 = vunpack.c.h.b16 %v168
    %v890 = vunpack.c.l.b16 %v169
    %v891 = vunpack.c.h.b16 %v169
    %v892 = vunpack.c.l.b16 %v170
    %v893 = vunpack.c.h.b16 %v170
    %v894 = vunpack.c.l.b16 %v171
    %v895 = vunpack.c.h.b16 %v171
    %v896 = vunpack.c.l.b16 %v172
    %v897 = vunpack.c.h.b16 %v172
    %v898 = vunpack.c.l.b16 %v173
    %v899 = vunpack.c.h.b16 %v173
    %v900 = vunpack.c.l.b16 %v174
    %v901 = vunpack.c.h.b16 %v174
    %v902 = vunpack.c.l.b16 %v175
    %v903 = vunpack.c.h.b16 %v175
    %v904 = vunpack.c.l.b16 %v176
    %v905 = vunpack.c.h.b16 %v176
    %v906 = vunpack.c.l.b16 %v177
    %v907 = vunpack.c.h.b16 %v177
    %v908 = vunpack.c.l.b16 %v178
    %v909 = vunpack.c.h.b16 %v178
    %v910 = vunpack.c.l.b16 %v179
    %v911 = vunpack.c.h.b16 %v179
    %v912 = vunpack.c.l.b16 %v180
    %v913 = vunpack.c.h.b16 %v180
    %v914 = vunpack.c.l.b16 %v181
    %v915 = vunpack.c.h.b16 %v181
    %v916 = vunpack.c.l.b16 %v182
    %v917 = vunpack.c.h.b16 %v182
    %v918 = vunpack.c.l.b16 %v183
    %v919 = vunpack.c.h.b16 %v183
    %v920 = vunpack.c.l.b16 %v184
    %v921 = vunpack.c.h.b16 %v184
    %v922 = vunpack.c.l.b16 %v185
    %v923 = vunpack.c.h.b16 %v185
    %v924 = vunpack.c.l.b16 %v186
    %v925 = vunpack.c.h.b16 %v186
    %v926 = vunpack.c.l.b16 %v187
    %v927 = vunpack.c.h.b16 %v187
    %v928 = vunpack.c.l.b16 %v188
    %v929 = vunpack.c.h.b16 %v188
    %v930 = vunpack.c.l.b16 %v189
    %v931 = vunpack.c.h.b16 %v189
    %v932 = vunpack.c.l.b16 %v190
    %v933 = vunpack.c.h.b16 %v190
    %v934 = vunpack.c.l.b16 %v191
    %v935 = vunpack.c.h.b16 %v191
    %v936 = vunpack.c.l.b16 %v192
    %v937 = vunpack.c.h.b16 %v192
    %v938 = vunpack.c.l.b16 %v193
    %v939 = vunpack.c.h.b16 %v193
    %v940 = vunpack.c.l.b16 %v194
    %v941 = vunpack.c.h.b16 %v194
    %v942 = vunpack.c.l.b16 %v195
    %v943 = vunpack.c.h.b16 %v195
    %v944 = vunpack.c.l.b16 %v196
    %v945 = vunpack.c.h.b16 %v196
    %v946 = vunpack.c.l.b16 %v197
    %v947 = vunpack.c.h.b16 %v197
    %v948 = vunpack.c.l.b16 %v198
    %v949 = vunpack.c.h.b16 %v198
    %v950 = vunpack.c.l.b16 %v199
    %v951 = vunpack.c.h.b16 %v199
    %v952 = vunpack.c.l.b16 %v200
    %v953 = vunpack.c.h.b16 %v200
    %v954 = vunpack.c.l.b16 %v201
    %v955 = vunpack.c.h.b16 %v201
    %v956 = vunpack.c.l.b16 %v202
    %v957 = vunpack.c.h.b16 %v202
    %v958 = vunpack.c.l.b16 %v203
    %v959 = vunpack.c.h.b16 %v203
    %v960 = vunpack.c.l.b16 %v204
    %v961 = vunpack.c.h.b16 %v204
    %v962 = vunpack.c.l.b16 %v205
    %v963 = vunpack.c.h.b16 %v205
    %v964 = vunpack.c.l.b16 %v206
    %v965 = vunpack.c.h.b16 %v206
    %v966 = vunpack.c.l.b16 %v207
    %v967 = vunpack.c.h.b16 %v207
    %v968 = vunpack.c.l.b16 %v208
    %v969 = vunpack.c.h.b16 %v208
    %v970 = vunpack.c.l.b16 %v209
    %v971 = vunpack.c.h.b16 %v209
    %v972 = vunpack.c.l.b16 %v210
    %v973 = vunpack.c.h.b16 %v210
    %v974 = vunpack.c.l.b16 %v211
    %v975 = vunpack.c.h.b16 %v211
    %v976 = vunpack.c.l.b16 %v212
    %v977 = vunpack.c.h.b16 %v212
    %v978 = vunpack.c.l.b16 %v213
    %v979 = vunpack.c.h.b16 %v213
    %v980 = vunpack.c.l.b16 %v214
    %v981 = vunpack.c.h.b16 %v214
    %v982 = vunpack.c.l.b16 %v215
    %v983 = vunpack.c.h.b16 %v215
    %v984 = vunpack.c.l.b16 %v216
    %v985 = vunpack.c.h.b16 %v216
    %v986 = vunpack.c.l.b16 %v217
    %v987 = vunpack.c.h.b16 %v217
    %v988 = vunpack.c.l.b16 %v218
    %v989 = vunpack.c.h.b16 %v218
    %v990 = vunpack.c.l.b16 %v219
    %v991 = vunpack.c.h.b16 %v219
    %v992 = vunpack.c.l.b16 %v220
    %v993 = vunpack.c.h.b16 %v220
    %v994 = vunpack.c.l.b16 %v221
    %v995 = vunpack.c.h.b16 %v221
    %v996 = vunpack.c.l.b16 %v222
    %v997 = vunpack.c.h.b16 %v222
    %v998 = vunpack.c.l.b16 %v223
    %v999 = vunpack.c.h.b16 %v223
    %v1000 = vunpack.c.l.b16 %v224
    %v1001 = vunpack.c.h.b16 %v224
    %v1002 = vunpack.c.l.b16 %v225
    %v1003 = vunpack.c.h.b16 %v225
    %v1004 = vunpack.c.l.b16 %v226
    %v1005 = vunpack.c.h.b16 %v226
    %v1006 = vunpack.c.l.b16 %v227
    %v1007 = vunpack.c.h.b16 %v227
    %v1008 = vunpack.c.l.b16 %v228
    %v1009 = vunpack.c.h.b16 %v228
    %v1010 = vunpack.c.l.b16 %v229
    %v1011 = vunpack.c.h.b16 %v229
    %v1012 = vunpack.c.l.b16 %v230
    %v1013 = vunpack.c.h.b16 %v230
    %v1014 = vunpack.c.l.b16 %v231
    %v1015 = vunpack.c.h.b16 %v231
    %v1016 = vunpack.c.l.b16 %v232
    %v1017 = vunpack.c.h.b16 %v232
    %v1018 = vunpack.c.l.b16 %v233
    %v1019 = vunpack.c.h.b16 %v233
    %v1020 = vunpack.c.l.b16 %v234
    %v1021 = vunpack.c.h.b16 %v234
    %v1022 = vunpack.c.l.b16 %v235
    %v1023 = vunpack.c.h.b16 %v235
    %v1024 = vunpack.c.l.b16 %v236
    %v1025 = vunpack.c.h.b16 %v236
    %v1026 = vunpack.c.l.b16 %v237
    %v1027 = vunpack.c.h.b16 %v237
    %v1028 = vunpack.c.l.b16 %v238
    %v1029 = vunpack.c.h.b16 %v238
    %v1030 = vunpack.c.l.b16 %v239
    %v1031 = vunpack.c.h.b16 %v239
    %v1032 = vunpack.c.l.b16 %v240
    %v1033 = vunpack.c.h.b16 %v240
    %v1034 = vunpack.c.l.b16 %v241
    %v1035 = vunpack.c.h.b16 %v241
    %v1036 = vunpack.c.l.b16 %v242
    %v1037 = vunpack.c.h.b16 %v242
    %v1038 = vunpack.c.l.b16 %v243
    %v1039 = vunpack.c.h.b16 %v243
    %v1040 = vunpack.c.l.b16 %v244
    %v1041 = vunpack.c.h.b16 %v244
    %v1042 = vunpack.c.l.b16 %v245
    %v1043 = vunpack.c.h.b16 %v245
    %v1044 = vunpack.c.l.b16 %v246
    %v1045 = vunpack.c.h.b16 %v246
    %v1046 = vunpack.c.l.b16 %v247
    %v1047 = vunpack.c.h.b16 %v247
    %v1048 = vunpack.c.l.b16 %v248
    %v1049 = vunpack.c.h.b16 %v248
    %v1050 = vunpack.c.l.b16 %v249
    %v1051 = vunpack.c.h.b16 %v249
    %v1052 = vunpack.c.l.b16 %v250
    %v1053 = vunpack.c.h.b16 %v250
    %v1054 = vunpack.c.l.b16 %v251
    %v1055 = vunpack.c.h.b16 %v251
    %v1056 = vunpack.c.l.b16 %v252
    %v1057 = vunpack.c.h.b16 %v252
    %v1058 = vunpack.c.l.b16 %v253
    %v1059 = vunpack.c.h.b16 %v253
    %v1060 = vunpack.c.l.b16 %v254
    %v1061 = vunpack.c.h.b16 %v254
    %v1062 = vunpack.c.l.b16 %v255
    %v1063 = vunpack.c.h.b16 %v255
    %v1064 = vunpack.c.l.b16 %v256
    %v1065 = vunpack.c.h.b16 %v256
    %v1066 = vunpack.c.l.b16 %v257
    %v1067 = vunpack.c.h.b16 %v257
    %v1068 = vunpack.c.l.b16 %v258
    %v1069 = vunpack.c.h.b16 %v258
    %v1070 = vunpack.c.l.b16 %v259
    %v1071 = vunpack.c.h.b16 %v259
    %v1072 = vunpack.c.l.b16 %v260
    %v1073 = vunpack.c.h.b16 %v260
    %v1074 = vunpack.c.l.b16 %v261
    %v1075 = vunpack.c.h.b16 %v261
    %v1076 = vunpack.c.l.b16 %v262
    %v1077 = vunpack.c.h.b16 %v262
    %v1078 = vunpack.c.l.b16 %v263
    %v1079 = vunpack.c.h.b16 %v263
    %v1080 = vunpack.c.l.b16 %v264
    %v1081 = vunpack.c.h.b16 %v264
    %v1082 = vunpack.c.l.b16 %v265
    %v1083 = vunpack.c.h.b16 %v265
    %v1084 = vunpack.c.l.b16 %v266
    %v1085 = vunpack.c.h.b16 %v266
    %v1086 = vunpack.c.l.b16 %v267
    %v1087 = vunpack.c.h.b16 %v267
    %v1088 = vunpack.c.l.b16 %v268
    %v1089 = vunpack.c.h.b16 %v268
    %v1090 = vunpack.c.l.b16 %v269
    %v1091 = vunpack.c.h.b16 %v269
    %v1092 = vunpack.c.l.b16 %v270
    %v1093 = vunpack.c.h.b16 %v270
    %v1094 = vunpack.c.l.b16 %v271
    %v1095 = vunpack.c.h.b16 %v271
    %v1096 = vunpack.c.l.b16 %v272
    %v1097 = vunpack.c.h.b16 %v272
    %v1098 = vunpack.c.l.b16 %v273
    %v1099 = vunpack.c.h.b16 %v273
    %v1100 = vunpack.c.l.b16 %v274
    %v1101 = vunpack.c.h.b16 %v274
    %v1102 = vunpack.c.l.b16 %v275
    %v1103 = vunpack.c.h.b16 %v275
    %v1104 = vunpack.c.l.b16 %v276
    %v1105 = vunpack.c.h.b16 %v276
    %v1106 = vunpack.c.l.b16 %v277
    %v1107 = vunpack.c.h.b16 %v277
    %v1108 = vunpack.c.l.b16 %v278
    %v1109 = vunpack.c.h.b16 %v278
    %v1110 = vunpack.c.l.b16 %v279
    %v1111 = vunpack.c.h.b16 %v279
    %v1112 = vunpack.c.l.b16 %v280
    %v1113 = vunpack.c.h.b16 %v280
    %v1114 = vunpack.c.l.b16 %v281
    %v1115 = vunpack.c.h.b16 %v281
    %v1116 = vunpack.c.l.b16 %v282
    %v1117 = vunpack.c.h.b16 %v282
    %v1118 = vunpack.c.l.b16 %v283
    %v1119 = vunpack.c.h.b16 %v283
    %v1120 = vunpack.c.l.b16 %v284
    %v1121 = vunpack.c.h.b16 %v284
    %v1122 = vunpack.c.l.b16 %v285
    %v1123 = vunpack.c.h.b16 %v285
    %v1124 = vunpack.c.l.b16 %v286
    %v1125 = vunpack.c.h.b16 %v286
    %v1126 = vunpack.c.l.b16 %v287
    %v1127 = vunpack.c.h.b16 %v287
    %v1128 = vunpack.c.l.b16 %v288
    %v1129 = vunpack.c.h.b16 %v288
    %v1130 = vunpack.c.l.b16 %v289
    %v1131 = vunpack.c.h.b16 %v289
    %v1132 = vunpack.c.l.b16 %v290
    %v1133 = vunpack.c.h.b16 %v290
    %v1134 = vunpack.c.l.b16 %v291
    %v1135 = vunpack.c.h.b16 %v291
    %v1136 = vunpack.c.l.b16 %v292
    %v1137 = vunpack.c.h.b16 %v292
    %v1138 = vunpack.c.l.b16 %v293
    %v1139 = vunpack.c.h.b16 %v293
    %v1140 = vunpack.c.l.b16 %v294
    %v1141 = vunpack.c.h.b16 %v294
    %v1142 = vunpack.c.l.b16 %v295
    %v1143 = vunpack.c.h.b16 %v295
    %v1144 = vpack.c.b16 %v636, %v632
    %v1145 = vpack.c.b16 %v637, %v633
    %v1146 = vpack.c.b16 %v638, %v634
    %v1147 = vpack.c.b16 %v639, %v635
    %v1148 = vpack.c.b16 %v644, %v640
    %v1149 = vpack.c.b16 %v645, %v641
    %v1150 = vpack.c.b16 %v646, %v642
    %v1151 = vpack.c.b16 %v647, %v643
    %v1152 = vpack.c.b16 %v652, %v648
    %v1153 = vpack.c.b16 %v653, %v649
    %v1154 = vpack.c.b16 %v654, %v650
    %v1155 = vpack.c.b16 %v655, %v651
    %v1156 = vpack.c.b16 %v660, %v656
    %v1157 = vpack.c.b16 %v661, %v657
    %v1158 = vpack.c.b16 %v662, %v658
    %v1159 = vpack.c.b16 %v663, %v659
    %v1160 = vpack.c.b16 %v668, %v664
    %v1161 = vpack.c.b16 %v669, %v665
    %v1162 = vpack.c.b16 %v670, %v666
    %v1163 = vpack.c.b16 %v671, %v667
    %v1164 = vpack.c.b16 %v676, %v672
    %v1165 = vpack.c.b16 %v677, %v673
    %v1166 = vpack.c.b16 %v678, %v674
    %v1167 = vpack.c.b16 %v679, %v675
    %v1168 = vpack.c.b16 %v684, %v680
    %v1169 = vpack.c.b16 %v685, %v681
    %v1170 = vpack.c.b16 %v686, %v682
    %v1171 = vpack.c.b16 %v687, %v683
    %v1172 = vpack.c.b16 %v692, %v688
    %v1173 = vpack.c.b16 %v693, %v689
    %v1174 = vpack.c.b16 %v694, %v690
    %v1175 = vpack.c.b16 %v695, %v691
    %v1176 = vpack.c.b16 %v700, %v696
    %v1177 = vpack.c.b16 %v701, %v697
    %v1178 = vpack.c.b16 %v702, %v698
    %v1179 = vpack.c.b16 %v703, %v699
    %v1180 = vpack.c.b16 %v708, %v704
    %v1181 = vpack.c.b16 %v709, %v705
    %v1182 = vpack.c.b16 %v710, %v706
    %v1183 = vpack.c.b16 %v711, %v707
    %v1184 = vpack.c.b16 %v716, %v712
    %v1185 = vpack.c.b16 %v717, %v713
    %v1186 = vpack.c.b16 %v718, %v714
    %v1187 = vpack.c.b16 %v719, %v715
    %v1188 = vpack.c.b16 %v724, %v720
    %v1189 = vpack.c.b16 %v725, %v721
    %v1190 = vpack.c.b16 %v726, %v722
    %v1191 = vpack.c.b16 %v727, %v723
    %v1192 = vpack.c.b16 %v732, %v728
    %v1193 = vpack.c.b16 %v733, %v729
    %v1194 = vpack.c.b16 %v734, %v730
    %v1195 = vpack.c.b16 %v735, %v731
    %v1196 = vpack.c.b16 %v740, %v736
    %v1197 = vpack.c.b16 %v741, %v737
    %v1198 = vpack.c.b16 %v742, %v738
    %v1199 = vpack.c.b16 %v743, %v739
    %v1200 = vpack.c.b16 %v748, %v744
    %v1201 = vpack.c.b16 %v749, %v745
    %v1202 = vpack.c.b16 %v750, %v746
    %v1203 = vpack.c.b16 %v751, %v747
    %v1204 = vpack.c.b16 %v756, %v752
    %v1205 = vpack.c.b16 %v757, %v753
    %v1206 = vpack.c.b16 %v758, %v754
    %v1207 = vpack.c.b16 %v759, %v755
    %v1208 = vpack.c.b16 %v764, %v760
    %v1209 = vpack.c.b16 %v765, %v761
    %v1210 = vpack.c.b16 %v766, %v762
    %v1211 = vpack.c.b16 %v767, %v763
    %v1212 = vpack.c.b16 %v772, %v768
    %v1213 = vpack.c.b16 %v773, %v769
    %v1214 = vpack.c.b16 %v774, %v770
    %v1215 = vpack.c.b16 %v775, %v771
    %v1216 = vpack.c.b16 %v780, %v776
    %v1217 = vpack.c.b16 %v781, %v777
    %v1218 = vpack.c.b16 %v782, %v778
    %v1219 = vpack.c.b16 %v783, %v779
    %v1220 = vpack.c.b16 %v788, %v784
    %v1221 = vpack.c.b16 %v789, %v785
    %v1222 = vpack.c.b16 %v790, %v786
    %v1223 = vpack.c.b16 %v791, %v787
    %v1224 = vpack.c.b16 %v796, %v792
    %v1225 = vpack.c.b16 %v797, %v793
    %v1226 = vpack.c.b16 %v798, %v794
    %v1227 = vpack.c.b16 %v799, %v795
    %v1228 = vpack.c.b16 %v804, %v800
    %v1229 = vpack.c.b16 %v805, %v801
    %v1230 = vpack.c.b16 %v806, %v802
    %v1231 = vpack.c.b16 %v807, %v803
    %v1232 = vpack.c.b16 %v812, %v808
    %v1233 = vpack.c.b16 %v813, %v809
    %v1234 = vpack.c.b16 %v814, %v810
    %v1235 = vpack.c.b16 %v815, %v811
    %v1236 = vpack.c.b16 %v820, %v816
    %v1237 = vpack.c.b16 %v821, %v817
    %v1238 = vpack.c.b16 %v822, %v818
    %v1239 = vpack.c.b16 %v823, %v819
    %v1240 = vpack.c.b16 %v828, %v824
    %v1241 = vpack.c.b16 %v829, %v825
    %v1242 = vpack.c.b16 %v830, %v826
    %v1243 = vpack.c.b16 %v831, %v827
    %v1244 = vpack.c.b16 %v836, %v832
    %v1245 = vpack.c.b16 %v837, %v833
    %v1246 = vpack.c.b16 %v838, %v834
    %v1247 = vpack.c.b16 %v839, %v835
    %v1248 = vpack.c.b16 %v844, %v840
    %v1249 = vpack.c.b16 %v845, %v841
    %v1250 = vpack.c.b16 %v846, %v842
    %v1251 = vpack.c.b16 %v847, %v843
    %v1252 = vpack.c.b16 %v852, %v848
    %v1253 = vpack.c.b16 %v853, %v849
    %v1254 = vpack.c.b16 %v854, %v850
    %v1255 = vpack.c.b16 %v855, %v851
    %v1256 = vpack.c.b16 %v860, %v856
    %v1257 = vpack.c.b16 %v861, %v857
    %v1258 = vpack.c.b16 %v862, %v858
    %v1259 = vpack.c.b16 %v863, %v859
    %v1260 = vpack.c.b16 %v868, %v864
    %v1261 = vpack.c.b16 %v869, %v865
    %v1262 = vpack.c.b16 %v870, %v866
    %v1263 = vpack.c.b16 %v871, %v867
    %v1264 = vpack.c.b16 %v876, %v872
    %v1265 = vpack.c.b16 %v877, %v873
    %v1266 = vpack.c.b16 %v878, %v874
    %v1267 = vpack.c.b16 %v879, %v875
    %v1268 = vpack.c.b16 %v884, %v880
    %v1269 = vpack.c.b16 %v885, %v881
    %v1270 = vpack.c.b16 %v886, %v882
    %v1271 = vpack.c.b16 %v887, %v883
    %v1272 = vpack.c.b16 %v892, %v888
    %v1273 = vpack.c.b16 %v893, %v889
    %v1274 = vpack.c.b16 %v894, %v890
    %v1275 = vpack.c.b16 %v895, %v891
    %v1276 = vpack.c.b16 %v900, %v896
    %v1277 = vpack.c.b16 %v901, %v897
    %v1278 = vpack.c.b16 %v902, %v898
    %v1279 = vpack.c.b16 %v903, %v899
    %v1280 = vpack.c.b16 %v908, %v904
    %v1281 = vpack.c.b16 %v909, %v905
    %v1282 = vpack.c.b16 %v910, %v906
    %v1283 = vpack.c.b16 %v911, %v907
    %v1284 = vpack.c.b16 %v916, %v912
    %v1285 = vpack.c.b16 %v917, %v913
    %v1286 = vpack.c.b16 %v918, %v914
    %v1287 = vpack.c.b16 %v919, %v915
    %v1288 = vpack.c.b16 %v924, %v920
    %v1289 = vpack.c.b16 %v925, %v921
    %v1290 = vpack.c.b16 %v926, %v922
    %v1291 = vpack.c.b16 %v927, %v923
    %v1292 = vpack.c.b16 %v932, %v928
    %v1293 = vpack.c.b16 %v933, %v929
    %v1294 = vpack.c.b16 %v934, %v930
    %v1295 = vpack.c.b16 %v935, %v931
    %v1296 = vpack.c.b16 %v940, %v936
    %v1297 = vpack.c.b16 %v941, %v937
    %v1298 = vpack.c.b16 %v942, %v938
    %v1299 = vpack.c.b16 %v943, %v939
    %v1300 = vpack.c.b16 %v948, %v944
    %v1301 = vpack.c.b16 %v949, %v945
    %v1302 = vpack.c.b16 %v950, %v946
    %v1303 = vpack.c.b16 %v951, %v947
    %v1304 = vpack.c.b16 %v956, %v952
    %v1305 = vpack.c.b16 %v957, %v953
    %v1306 = vpack.c.b16 %v958, %v954
    %v1307 = vpack.c.b16 %v959, %v955
    %v1308 = vpack.c.b16 %v964, %v960
    %v1309 = vpack.c.b16 %v965, %v961
    %v1310 = vpack.c.b16 %v966, %v962
    %v1311 = vpack.c.b16 %v967, %v963
    %v1312 = vpack.c.b16 %v972, %v968
    %v1313 = vpack.c.b16 %v973, %v969
    %v1314 = vpack.c.b16 %v974, %v970
    %v1315 = vpack.c.b16 %v975, %v971
    %v1316 = vpack.c.b16 %v980, %v976
    %v1317 = vpack.c.b16 %v981, %v977
    %v1318 = vpack.c.b16 %v982, %v978
    %v1319 = vpack.c.b16 %v983, %v979
    %v1320 = vpack.c.b16 %v988, %v984
    %v1321 = vpack.c.b16 %v989, %v985
    %v1322 = vpack.c.b16 %v990, %v986
    %v1323 = vpack.c.b16 %v991, %v987
    %v1324 = vpack.c.b16 %v996, %v992
    %v1325 = vpack.c.b16 %v997, %v993
    %v1326 = vpack.c.b16 %v998, %v994
    %v1327 = vpack.c.b16 %v999, %v995
    %v1328 = vpack.c.b16 %v1004, %v1000
    %v1329 = vpack.c.b16 %v1005, %v1001
    %v1330 = vpack.c.b16 %v1006, %v1002
    %v1331 = vpack.c.b16 %v1007, %v1003
    %v1332 = vpack.c.b16 %v1012, %v1008
    %v1333 = vpack.c.b16 %v1013, %v1009
    %v1334 = vpack.c.b16 %v1014, %v1010
    %v1335 = vpack.c.b16 %v1015, %v1011
    %v1336 = vpack.c.b16 %v1020, %v1016
    %v1337 = vpack.c.b16 %v1021, %v1017
    %v1338 = vpack.c.b16 %v1022, %v1018
    %v1339 = vpack.c.b16 %v1023, %v1019
    %v1340 = vpack.c.b16 %v1028, %v1024
    %v1341 = vpack.c.b16 %v1029, %v1025
    %v1342 = vpack.c.b16 %v1030, %v1026
    %v1343 = vpack.c.b16 %v1031, %v1027
    %v1344 = vpack.c.b16 %v1036, %v1032
    %v1345 = vpack.c.b16 %v1037, %v1033
    %v1346 = vpack.c.b16 %v1038, %v1034
    %v1347 = vpack.c.b16 %v1039, %v1035
    %v1348 = vpack.c.b16 %v1044, %v1040
    %v1349 = vpack.c.b16 %v1045, %v1041
    %v1350 = vpack.c.b16 %v1046, %v1042
    %v1351 = vpack.c.b16 %v1047, %v1043
    %v1352 = vpack.c.b16 %v1052, %v1048
    %v1353 = vpack.c.b16 %v1053, %v1049
    %v1354 = vpack.c.b16 %v1054, %v1050
    %v1355 = vpack.c.b16 %v1055, %v1051
    %v1356 = vpack.c.b16 %v1060, %v1056
    %v1357 = vpack.c.b16 %v1061, %v1057
    %v1358 = vpack.c.b16 %v1062, %v1058
    %v1359 = vpack.c.b16 %v1063, %v1059
    %v1360 = vpack.c.b16 %v1068, %v1064
    %v1361 = vpack.c.b16 %v1069, %v1065
    %v1362 = vpack.c.b16 %v1070, %v1066
    %v1363 = vpack.c.b16 %v1071, %v1067
    %v1364 = vpack.c.b16 %v1076, %v1072
    %v1365 = vpack.c.b16 %v1077, %v1073
    %v1366 = vpack.c.b16 %v1078, %v1074
    %v1367 = vpack.c.b16 %v1079, %v1075
    %v1368 = vpack.c.b16 %v1084, %v1080
    %v1369 = vpack.c.b16 %v1085, %v1081
    %v1370 = vpack.c.b16 %v1086, %v1082
    %v1371 = vpack.c.b16 %v1087, %v1083
    %v1372 = vpack.c.b16 %v1092, %v1088
    %v1373 = vpack.c.b16 %v1093, %v1089
    %v1374 = vpack.c.b16 %v1094, %v1090
    %v1375 = vpack.c.b16 %v1095, %v1091
    %v1376 = vpack.c.b16 %v1100, %v1096
    %v1377 = vpack.c.b16 %v1101, %v1097
    %v1378 = vpack.c.b16 %v1102, %v1098
    %v1379 = vpack.c.b16 %v1103, %v1099
    %v1380 = vpack.c.b16 %v1108, %v1104
    %v1381 = vpack.c.b16 %v1109, %v1105
    %v1382 = vpack.c.b16 %v1110, %v1106
    %v1383 = vpack.c.b16 %v1111, %v1107
    %v1384 = vpack.c.b16 %v1116, %v1112
    %v1385 = vpack.c.b16 %v1117, %v1113
    %v1386 = vpack.c.b16 %v1118, %v1114
    %v1387 = vpack.c.b16 %v1119, %v1115
    %v1388 = vpack.c.b16 %v1124, %v1120
    %v1389 = vpack.c.b16 %v1125, %v1121
    %v1390 = vpack.c.b16 %v1126, %v1122
    %v1391 = vpack.c.b16 %v1127, %v1123
    %v1392 = vpack.c.b16 %v1132, %v1128
    %v1393 = vpack.c.b16 %v1133, %v1129
    %v1394 = vpack.c.b16 %v1134, %v1130
    %v1395 = vpack.c.b16 %v1135, %v1131
    %v1396 = vpack.c.b16 %v1140, %v1136
    %v1397 = vpack.c.b16 %v1141, %v1137
    %v1398 = vpack.c.b16 %v1142, %v1138
    %v1399 = vpack.c.b16 %v1143, %v1139
    %1656 = vmatprep.subr.bf16.mxu0 %v1145
    %1657 = vmatpush1.bf16.msra.mxu0 %v1144
    %1658 = vmatprep.subr.bf16.mxu0 %v1149
    %1659 = vmatpush1.bf16.msra.mxu0 %v1148
    %1660 = vmatprep.subr.bf16.mxu0 %v1153
    %1661 = vmatpush1.bf16.msra.mxu0 %v1152
    %1662 = vmatprep.subr.bf16.mxu0 %v1157
    %1663 = vmatpush1.bf16.msra.mxu0 %v1156
    %1664 = vmatprep.subr.bf16.mxu0 %v1161
    %1665 = vmatpush1.bf16.msra.mxu0 %v1160
    %1666 = vmatprep.subr.bf16.mxu0 %v1165
    %1667 = vmatpush1.bf16.msra.mxu0 %v1164
    %1668 = vmatprep.subr.bf16.mxu0 %v1169
    %1669 = vmatpush1.bf16.msra.mxu0 %v1168
    %1670 = vmatprep.subr.bf16.mxu0 %v1173
    %1671 = vmatpush1.bf16.msra.mxu0 %v1172
    %1672 = vmatprep.subr.bf16.mxu0 %v1177
    %1673 = vmatpush1.bf16.msra.mxu0 %v1176
    %1674 = vmatprep.subr.bf16.mxu0 %v1181
    %1675 = vmatpush1.bf16.msra.mxu0 %v1180
    %1676 = vmatprep.subr.bf16.mxu0 %v1185
    %1677 = vmatpush1.bf16.msra.mxu0 %v1184
    %1678 = vmatprep.subr.bf16.mxu0 %v1189
    %1679 = vmatpush1.bf16.msra.mxu0 %v1188
    %1680 = vmatprep.subr.bf16.mxu0 %v1193
    %1681 = vmatpush1.bf16.msra.mxu0 %v1192
    %1682 = vmatprep.subr.bf16.mxu0 %v1197
    %1683 = vmatpush1.bf16.msra.mxu0 %v1196
    %1684 = vmatprep.subr.bf16.mxu0 %v1201
    %1685 = vmatpush1.bf16.msra.mxu0 %v1200
    %1686 = vmatprep.subr.bf16.mxu0 %v1205
    %1687 = vmatpush1.bf16.msra.mxu0 %v1204
    %1688 = vmatprep.mubr.bf16.mxu0 %v356
    %1689 = vmatmul.mubr.bf16.gmra.mrb[0].mxu0 %v342
    %v1690 = vpop.f32.mrb[0].mxu0
    %v1691 = vadd.f32 %v305, %v1690
    %v1692 = vpop.f32.mrb[0].mxu0
    %v1693 = vadd.f32 %v309, %v1692
    %v1694 = vpop.f32.mrb[0].mxu0
    %v1695 = vpop.f32.mrb[0].mxu0
    %1696 = vdwg.mxu0
    %1697 = vmatprep.subr.bf16.mxu0 %v1209
    %1698 = vmatpush1.bf16.msra.mxu0 %v1208
    %1699 = vmatprep.subr.bf16.mxu0 %v1213
    %1700 = vmatpush1.bf16.msra.mxu0 %v1212
    %1701 = vmatprep.subr.bf16.mxu0 %v1217
    %1702 = vmatpush1.bf16.msra.mxu0 %v1216
    %1703 = vmatprep.subr.bf16.mxu0 %v1221
    %1704 = vmatpush1.bf16.msra.mxu0 %v1220
    %1705 = vmatprep.subr.bf16.mxu0 %v1225
    %1706 = vmatpush1.bf16.msra.mxu0 %v1224
    %1707 = vmatprep.subr.bf16.mxu0 %v1229
    %1708 = vmatpush1.bf16.msra.mxu0 %v1228
    %1709 = vmatprep.subr.bf16.mxu0 %v1233
    %1710 = vmatpush1.bf16.msra.mxu0 %v1232
    %1711 = vmatprep.subr.bf16.mxu0 %v1237
    %1712 = vmatpush1.bf16.msra.mxu0 %v1236
    %1713 = vmatprep.subr.bf16.mxu0 %v1241
    %1714 = vmatpush1.bf16.msra.mxu0 %v1240
    %1715 = vmatprep.subr.bf16.mxu0 %v1245
    %1716 = vmatpush1.bf16.msra.mxu0 %v1244
    %1717 = vmatprep.subr.bf16.mxu0 %v1249
    %1718 = vmatpush1.bf16.msra.mxu0 %v1248
    %1719 = vmatprep.subr.bf16.mxu0 %v1253
    %1720 = vmatpush1.bf16.msra.mxu0 %v1252
    %1721 = vmatprep.subr.bf16.mxu0 %v1257
    %1722 = vmatpush1.bf16.msra.mxu0 %v1256
    %1723 = vmatprep.subr.bf16.mxu0 %v1261
    %1724 = vmatpush1.bf16.msra.mxu0 %v1260
    %1725 = vmatprep.subr.bf16.mxu0 %v1265
    %1726 = vmatpush1.bf16.msra.mxu0 %v1264
    %1727 = vmatprep.subr.bf16.mxu0 %v1269
    %1728 = vmatpush1.bf16.msra.mxu0 %v1268
    %1729 = vmatprep.mubr.bf16.mxu0 %v366
    %1730 = vmatmul.mubr.bf16.gmra.mrb[0].mxu0 %v364
    %v1731 = vpop.f32.mrb[0].mxu0
    %v1732 = vadd.f32 %v1691, %v1731
    %v1733 = vpop.f32.mrb[0].mxu0
    %v1734 = vadd.f32 %v1693, %v1733
    %v1735 = vpop.f32.mrb[0].mxu0
    %v1736 = vpop.f32.mrb[0].mxu0
    %1737 = vdwg.mxu0
    %1738 = vmatprep.subr.bf16.mxu0 %v1273
    %1739 = vmatpush1.bf16.msra.mxu0 %v1272
    %1740 = vmatprep.subr.bf16.mxu0 %v1277
    %1741 = vmatpush1.bf16.msra.mxu0 %v1276
    %1742 = vmatprep.subr.bf16.mxu0 %v1281
    %1743 = vmatpush1.bf16.msra.mxu0 %v1280
    %1744 = vmatprep.subr.bf16.mxu0 %v1285
    %1745 = vmatpush1.bf16.msra.mxu0 %v1284
    %1746 = vmatprep.subr.bf16.mxu0 %v1289
    %1747 = vmatpush1.bf16.msra.mxu0 %v1288
    %1748 = vmatprep.subr.bf16.mxu0 %v1293
    %1749 = vmatpush1.bf16.msra.mxu0 %v1292
    %1750 = vmatprep.subr.bf16.mxu0 %v1297
    %1751 = vmatpush1.bf16.msra.mxu0 %v1296
    %1752 = vmatprep.subr.bf16.mxu0 %v1301
    %1753 = vmatpush1.bf16.msra.mxu0 %v1300
    %1754 = vmatprep.subr.bf16.mxu0 %v1305
    %1755 = vmatpush1.bf16.msra.mxu0 %v1304
    %1756 = vmatprep.subr.bf16.mxu0 %v1309
    %1757 = vmatpush1.bf16.msra.mxu0 %v1308
    %1758 = vmatprep.subr.bf16.mxu0 %v1313
    %1759 = vmatpush1.bf16.msra.mxu0 %v1312
    %1760 = vmatprep.subr.bf16.mxu0 %v1317
    %1761 = vmatpush1.bf16.msra.mxu0 %v1316
    %1762 = vmatprep.subr.bf16.mxu0 %v1321
    %1763 = vmatpush1.bf16.msra.mxu0 %v1320
    %1764 = vmatprep.subr.bf16.mxu0 %v1325
    %1765 = vmatpush1.bf16.msra.mxu0 %v1324
    %1766 = vmatprep.subr.bf16.mxu0 %v1329
    %1767 = vmatpush1.bf16.msra.mxu0 %v1328
    %1768 = vmatprep.subr.bf16.mxu0 %v1333
    %1769 = vmatpush1.bf16.msra.mxu0 %v1332
    %1770 = vmatprep.mubr.bf16.mxu0 %v363
    %1771 = vmatmul.mubr.bf16.gmra.mrb[0].mxu0 %v349
    %v1772 = vpop.f32.mrb[0].mxu0
    %v1773 = vadd.f32 %v1732, %v1772
    %v1774 = vpop.f32.mrb[0].mxu0
    %v1775 = vadd.f32 %v1734, %v1774
    %v1776 = vpop.f32.mrb[0].mxu0
    %v1777 = vpop.f32.mrb[0].mxu0
    %1778 = vdwg.mxu0
    %1779 = vmatprep.subr.bf16.mxu0 %v1337
    %1780 = vmatpush1.bf16.msra.mxu0 %v1336
    %1781 = vmatprep.subr.bf16.mxu0 %v1341
    %1782 = vmatpush1.bf16.msra.mxu0 %v1340
    %1783 = vmatprep.subr.bf16.mxu0 %v1345
    %1784 = vmatpush1.bf16.msra.mxu0 %v1344
    %1785 = vmatprep.subr.bf16.mxu0 %v1349
    %1786 = vmatpush1.bf16.msra.mxu0 %v1348
    %1787 = vmatprep.subr.bf16.mxu0 %v1353
    %1788 = vmatpush1.bf16.msra.mxu0 %v1352
    %1789 = vmatprep.subr.bf16.mxu0 %v1357
    %1790 = vmatpush1.bf16.msra.mxu0 %v1356
    %1791 = vmatprep.subr.bf16.mxu0 %v1361
    %1792 = vmatpush1.bf16.msra.mxu0 %v1360
    %1793 = vmatprep.subr.bf16.mxu0 %v1365
    %1794 = vmatpush1.bf16.msra.mxu0 %v1364
    %1795 = vmatprep.subr.bf16.mxu0 %v1369
    %1796 = vmatpush1.bf16.msra.mxu0 %v1368
    %1797 = vmatprep.subr.bf16.mxu0 %v1373
    %1798 = vmatpush1.bf16.msra.mxu0 %v1372
    %1799 = vmatprep.subr.bf16.mxu0 %v1377
    %1800 = vmatpush1.bf16.msra.mxu0 %v1376
    %1801 = vmatprep.subr.bf16.mxu0 %v1381
    %1802 = vmatpush1.bf16.msra.mxu0 %v1380
    %1803 = vmatprep.subr.bf16.mxu0 %v1385
    %1804 = vmatpush1.bf16.msra.mxu0 %v1384
    %1805 = vmatprep.subr.bf16.mxu0 %v1389
    %1806 = vmatpush1.bf16.msra.mxu0 %v1388
    %1807 = vmatprep.subr.bf16.mxu0 %v1393
    %1808 = vmatpush1.bf16.msra.mxu0 %v1392
    %1809 = vmatprep.subr.bf16.mxu0 %v1397
    %1810 = vmatpush1.bf16.msra.mxu0 %v1396
    %1811 = vmatprep.mubr.bf16.mxu0 %v367
    %1812 = vmatmul.mubr.bf16.gmra.mrb[0].mxu0 %v365
    %v1813 = vpop.f32.mrb[0].mxu0
    %v1814 = vadd.f32 %v1773, %v1813
    %v1815 = vpop.f32.mrb[0].mxu0
    %v1816 = vadd.f32 %v1775, %v1815
    %v1817 = vpop.f32.mrb[0].mxu0
    %v1818 = vpop.f32.mrb[0].mxu0
    %1819 = vdwg.mxu0
    %1820 = vmatprep.subr.bf16.mxu0 %v1147
    %1821 = vmatpush1.bf16.msra.mxu0 %v1146
    %1822 = vmatprep.subr.bf16.mxu0 %v1151
    %1823 = vmatpush1.bf16.msra.mxu0 %v1150
    %1824 = vmatprep.subr.bf16.mxu0 %v1155
    %1825 = vmatpush1.bf16.msra.mxu0 %v1154
    %1826 = vmatprep.subr.bf16.mxu0 %v1159
    %1827 = vmatpush1.bf16.msra.mxu0 %v1158
    %1828 = vmatprep.subr.bf16.mxu0 %v1163
    %1829 = vmatpush1.bf16.msra.mxu0 %v1162
    %1830 = vmatprep.subr.bf16.mxu0 %v1167
    %1831 = vmatpush1.bf16.msra.mxu0 %v1166
    %1832 = vmatprep.subr.bf16.mxu0 %v1171
    %1833 = vmatpush1.bf16.msra.mxu0 %v1170
    %1834 = vmatprep.subr.bf16.mxu0 %v1175
    %1835 = vmatpush1.bf16.msra.mxu0 %v1174
    %1836 = vmatprep.subr.bf16.mxu0 %v1179
    %1837 = vmatpush1.bf16.msra.mxu0 %v1178
    %1838 = vmatprep.subr.bf16.mxu0 %v1183
    %1839 = vmatpush1.bf16.msra.mxu0 %v1182
    %1840 = vmatprep.subr.bf16.mxu0 %v1187
    %1841 = vmatpush1.bf16.msra.mxu0 %v1186
    %1842 = vmatprep.subr.bf16.mxu0 %v1191
    %1843 = vmatpush1.bf16.msra.mxu0 %v1190
    %1844 = vmatprep.subr.bf16.mxu0 %v1195
    %1845 = vmatpush1.bf16.msra.mxu0 %v1194
    %1846 = vmatprep.subr.bf16.mxu0 %v1199
    %1847 = vmatpush1.bf16.msra.mxu0 %v1198
    %1848 = vmatprep.subr.bf16.mxu0 %v1203
    %1849 = vmatpush1.bf16.msra.mxu0 %v1202
    %1850 = vmatprep.subr.bf16.mxu0 %v1207
    %1851 = vmatpush1.bf16.msra.mxu0 %v1206
    %1852 = vmatprep.mubr.bf16.mxu0 %v356
    %1853 = vmatmul.mubr.bf16.gmra.mrb[0].mxu0 %v342
    %v1854 = vpop.f32.mrb[0].mxu0
    %v1855 = vadd.f32 %v313, %v1854
    %v1856 = vpop.f32.mrb[0].mxu0
    %v1857 = vadd.f32 %v317, %v1856
    %v1858 = vpop.f32.mrb[0].mxu0
    %v1859 = vpop.f32.mrb[0].mxu0
    %1860 = vdwg.mxu0
    %1861 = vmatprep.subr.bf16.mxu0 %v1211
    %1862 = vmatpush1.bf16.msra.mxu0 %v1210
    %1863 = vmatprep.subr.bf16.mxu0 %v1215
    %1864 = vmatpush1.bf16.msra.mxu0 %v1214
    %1865 = vmatprep.subr.bf16.mxu0 %v1219
    %1866 = vmatpush1.bf16.msra.mxu0 %v1218
    %1867 = vmatprep.subr.bf16.mxu0 %v1223
    %1868 = vmatpush1.bf16.msra.mxu0 %v1222
    %1869 = vmatprep.subr.bf16.mxu0 %v1227
    %1870 = vmatpush1.bf16.msra.mxu0 %v1226
    %1871 = vmatprep.subr.bf16.mxu0 %v1231
    %1872 = vmatpush1.bf16.msra.mxu0 %v1230
    %1873 = vmatprep.subr.bf16.mxu0 %v1235
    %1874 = vmatpush1.bf16.msra.mxu0 %v1234
    %1875 = vmatprep.subr.bf16.mxu0 %v1239
    %1876 = vmatpush1.bf16.msra.mxu0 %v1238
    %1877 = vmatprep.subr.bf16.mxu0 %v1243
    %1878 = vmatpush1.bf16.msra.mxu0 %v1242
    %1879 = vmatprep.subr.bf16.mxu0 %v1247
    %1880 = vmatpush1.bf16.msra.mxu0 %v1246
    %1881 = vmatprep.subr.bf16.mxu0 %v1251
    %1882 = vmatpush1.bf16.msra.mxu0 %v1250
    %1883 = vmatprep.subr.bf16.mxu0 %v1255
    %1884 = vmatpush1.bf16.msra.mxu0 %v1254
    %1885 = vmatprep.subr.bf16.mxu0 %v1259
    %1886 = vmatpush1.bf16.msra.mxu0 %v1258
    %1887 = vmatprep.subr.bf16.mxu0 %v1263
    %1888 = vmatpush1.bf16.msra.mxu0 %v1262
    %1889 = vmatprep.subr.bf16.mxu0 %v1267
    %1890 = vmatpush1.bf16.msra.mxu0 %v1266
    %1891 = vmatprep.subr.bf16.mxu0 %v1271
    %1892 = vmatpush1.bf16.msra.mxu0 %v1270
    %1893 = vmatprep.mubr.bf16.mxu0 %v366
    %1894 = vmatmul.mubr.bf16.gmra.mrb[0].mxu0 %v364
    %v1895 = vpop.f32.mrb[0].mxu0
    %v1896 = vadd.f32 %v1855, %v1895
    %v1897 = vpop.f32.mrb[0].mxu0
    %v1898 = vadd.f32 %v1857, %v1897
    %v1899 = vpop.f32.mrb[0].mxu0
    %v1900 = vpop.f32.mrb[0].mxu0
    %1901 = vdwg.mxu0
    %1902 = vmatprep.subr.bf16.mxu0 %v1275
    %1903 = vmatpush1.bf16.msra.mxu0 %v1274
    %1904 = vmatprep.subr.bf16.mxu0 %v1279
    %1905 = vmatpush1.bf16.msra.mxu0 %v1278
    %1906 = vmatprep.subr.bf16.mxu0 %v1283
    %1907 = vmatpush1.bf16.msra.mxu0 %v1282
    %1908 = vmatprep.subr.bf16.mxu0 %v1287
    %1909 = vmatpush1.bf16.msra.mxu0 %v1286
    %1910 = vmatprep.subr.bf16.mxu0 %v1291
    %1911 = vmatpush1.bf16.msra.mxu0 %v1290
    %1912 = vmatprep.subr.bf16.mxu0 %v1295
    %1913 = vmatpush1.bf16.msra.mxu0 %v1294
    %1914 = vmatprep.subr.bf16.mxu0 %v1299
    %1915 = vmatpush1.bf16.msra.mxu0 %v1298
    %1916 = vmatprep.subr.bf16.mxu0 %v1303
    %1917 = vmatpush1.bf16.msra.mxu0 %v1302
    %1918 = vmatprep.subr.bf16.mxu0 %v1307
    %1919 = vmatpush1.bf16.msra.mxu0 %v1306
    %1920 = vmatprep.subr.bf16.mxu0 %v1311
    %1921 = vmatpush1.bf16.msra.mxu0 %v1310
    %1922 = vmatprep.subr.bf16.mxu0 %v1315
    %1923 = vmatpush1.bf16.msra.mxu0 %v1314
    %1924 = vmatprep.subr.bf16.mxu0 %v1319
    %1925 = vmatpush1.bf16.msra.mxu0 %v1318
    %1926 = vmatprep.subr.bf16.mxu0 %v1323
    %1927 = vmatpush1.bf16.msra.mxu0 %v1322
    %1928 = vmatprep.subr.bf16.mxu0 %v1327
    %1929 = vmatpush1.bf16.msra.mxu0 %v1326
    %1930 = vmatprep.subr.bf16.mxu0 %v1331
    %1931 = vmatpush1.bf16.msra.mxu0 %v1330
    %1932 = vmatprep.subr.bf16.mxu0 %v1335
    %1933 = vmatpush1.bf16.msra.mxu0 %v1334
    %1934 = vmatprep.mubr.bf16.mxu0 %v363
    %1935 = vmatmul.mubr.bf16.gmra.mrb[0].mxu0 %v349
    %v1936 = vpop.f32.mrb[0].mxu0
    %v1937 = vadd.f32 %v1896, %v1936
    %v1938 = vpop.f32.mrb[0].mxu0
    %v1939 = vadd.f32 %v1898, %v1938
    %v1940 = vpop.f32.mrb[0].mxu0
    %v1941 = vpop.f32.mrb[0].mxu0
    %1942 = vdwg.mxu0
    %1943 = vmatprep.subr.bf16.mxu0 %v1339
    %1944 = vmatpush1.bf16.msra.mxu0 %v1338
    %1945 = vmatprep.subr.bf16.mxu0 %v1343
    %1946 = vmatpush1.bf16.msra.mxu0 %v1342
    %1947 = vmatprep.subr.bf16.mxu0 %v1347
    %1948 = vmatpush1.bf16.msra.mxu0 %v1346
    %1949 = vmatprep.subr.bf16.mxu0 %v1351
    %1950 = vmatpush1.bf16.msra.mxu0 %v1350
    %1951 = vmatprep.subr.bf16.mxu0 %v1355
    %1952 = vmatpush1.bf16.msra.mxu0 %v1354
    %1953 = vmatprep.subr.bf16.mxu0 %v1359
    %1954 = vmatpush1.bf16.msra.mxu0 %v1358
    %1955 = vmatprep.subr.bf16.mxu0 %v1363
    %1956 = vmatpush1.bf16.msra.mxu0 %v1362
    %1957 = vmatprep.subr.bf16.mxu0 %v1367
    %1958 = vmatpush1.bf16.msra.mxu0 %v1366
    %1959 = vmatprep.subr.bf16.mxu0 %v1371
    %1960 = vmatpush1.bf16.msra.mxu0 %v1370
    %1961 = vmatprep.subr.bf16.mxu0 %v1375
    %1962 = vmatpush1.bf16.msra.mxu0 %v1374
    %1963 = vmatprep.subr.bf16.mxu0 %v1379
    %1964 = vmatpush1.bf16.msra.mxu0 %v1378
    %1965 = vmatprep.subr.bf16.mxu0 %v1383
    %1966 = vmatpush1.bf16.msra.mxu0 %v1382
    %1967 = vmatprep.subr.bf16.mxu0 %v1387
    %1968 = vmatpush1.bf16.msra.mxu0 %v1386
    %1969 = vmatprep.subr.bf16.mxu0 %v1391
    %1970 = vmatpush1.bf16.msra.mxu0 %v1390
    %1971 = vmatprep.subr.bf16.mxu0 %v1395
    %1972 = vmatpush1.bf16.msra.mxu0 %v1394
    %1973 = vmatprep.subr.bf16.mxu0 %v1399
    %1974 = vmatpush1.bf16.msra.mxu0 %v1398
    %1975 = vmatprep.mubr.bf16.mxu0 %v367
    %1976 = vmatmul.mubr.bf16.gmra.mrb[0].mxu0 %v365
    %v1977 = vpop.f32.mrb[0].mxu0
    %v1978 = vadd.f32 %v1937, %v1977
    %v1979 = vpop.f32.mrb[0].mxu0
    %v1980 = vadd.f32 %v1939, %v1979
    %v1981 = vpop.f32.mrb[0].mxu0
    %v1982 = vpop.f32.mrb[0].mxu0
    %1983 = vdwg.mxu0
    %v1984 = vmax.f32 %v1814, 0.0
    %v1985 = vmax.f32 %v1816, 0.0
    %v1986 = vmax.f32 %v1978, 0.0
    %v1987 = vmax.f32 %v1980, 0.0
    %v1988 = vpack.c.bf16 %v1984, %v1984
    %v1989 = vpack.c.bf16 %v1985, %v1985
    %v1990 = vpack.c.bf16 %v1986, %v1986
    %v1991 = vpack.c.bf16 %v1987, %v1987
    %v1992 = vld [vmem:[#allocation5 + $0x820] sm:$0xf]
    %v1993 = vld [vmem:[#allocation5 + $0x830] sm:$0xf]
    %v1994 = vld [vmem:[#allocation5 + $0x840] sm:$0xf]
    %v1995 = vld [vmem:[#allocation5 + $0x850] sm:$0xf]
    %v1996 = vld [vmem:[#allocation5 + $0x860] sm:$0xf]
    %v1997 = vld [vmem:[#allocation5 + $0x870] sm:$0xf]
    %v1998 = vld [vmem:[#allocation5 + $0x880] sm:$0xf]
    %v1999 = vld [vmem:[#allocation5 + $0x890] sm:$0xf]
    %v2000 = vld [vmem:[#allocation5 + $0x8a0] sm:$0xf]
    %v2001 = vld [vmem:[#allocation5 + $0x8b0] sm:$0xf]
    %v2002 = vld [vmem:[#allocation5 + $0x8c0] sm:$0xf]
    %v2003 = vld [vmem:[#allocation5 + $0x8d0] sm:$0xf]
    %v2004 = vld [vmem:[#allocation5 + $0x8e0] sm:$0xf]
    %v2005 = vld [vmem:[#allocation5 + $0x8f0] sm:$0xf]
    %v2006 = vld [vmem:[#allocation5 + $0x900] sm:$0xf]
    %v2007 = vld [vmem:[#allocation5 + $0x910] sm:$0xf]
    %v2008 = vld [vmem:[#allocation5 + $0x920] sm:$0xf]
    %v2009 = vld [vmem:[#allocation5 + $0x930] sm:$0xf]
    %v2010 = vld [vmem:[#allocation5 + $0x940] sm:$0xf]
    %v2011 = vld [vmem:[#allocation5 + $0x950] sm:$0xf]
    %v2012 = vld [vmem:[#allocation5 + $0x960] sm:$0xf]
    %v2013 = vld [vmem:[#allocation5 + $0x970] sm:$0xf]
    %v2014 = vld [vmem:[#allocation5 + $0x980] sm:$0xf]
    %v2015 = vld [vmem:[#allocation5 + $0x990] sm:$0xf]
    %v2016 = vld [vmem:[#allocation5 + $0x9a0] sm:$0xf]
    %v2017 = vld [vmem:[#allocation5 + $0x9b0] sm:$0xf]
    %v2018 = vld [vmem:[#allocation5 + $0x9c0] sm:$0xf]
    %v2019 = vld [vmem:[#allocation5 + $0x9d0] sm:$0xf]
    %v2020 = vld [vmem:[#allocation5 + $0x9e0] sm:$0xf]
    %v2021 = vld [vmem:[#allocation5 + $0x9f0] sm:$0xf]
    %v2022 = vld [vmem:[#allocation5 + $0xa00] sm:$0xf]
    %v2023 = vld [vmem:[#allocation5 + $0xa10] sm:$0xf]
    %v2024 = vld [vmem:[#allocation5 + $0xa20] sm:$0xf]
    %v2025 = vld [vmem:[#allocation5 + $0xa30] sm:$0xf]
    %v2026 = vld [vmem:[#allocation5 + $0xa40] sm:$0xf]
    %v2027 = vld [vmem:[#allocation5 + $0xa50] sm:$0xf]
    %v2028 = vld [vmem:[#allocation5 + $0xa60] sm:$0xf]
    %v2029 = vld [vmem:[#allocation5 + $0xa70] sm:$0xf]
    %v2030 = vld [vmem:[#allocation5 + $0xa80] sm:$0xf]
    %v2031 = vld [vmem:[#allocation5 + $0xa90] sm:$0xf]
    %v2032 = vld [vmem:[#allocation5 + $0xaa0] sm:$0xf]
    %v2033 = vld [vmem:[#allocation5 + $0xab0] sm:$0xf]
    %v2034 = vld [vmem:[#allocation5 + $0xac0] sm:$0xf]
    %v2035 = vld [vmem:[#allocation5 + $0xad0] sm:$0xf]
    %v2036 = vld [vmem:[#allocation5 + $0xae0] sm:$0xf]
    %v2037 = vld [vmem:[#allocation5 + $0xaf0] sm:$0xf]
    %v2038 = vld [vmem:[#allocation5 + $0xb00] sm:$0xf]
    %v2039 = vld [vmem:[#allocation5 + $0xb10] sm:$0xf]
    %v2040 = vld [vmem:[#allocation5 + $0xb20] sm:$0xf]
    %v2041 = vld [vmem:[#allocation5 + $0xb30] sm:$0xf]
    %v2042 = vld [vmem:[#allocation5 + $0xb40] sm:$0xf]
    %v2043 = vld [vmem:[#allocation5 + $0xb50] sm:$0xf]
    %v2044 = vld [vmem:[#allocation5 + $0xb60] sm:$0xf]
    %v2045 = vld [vmem:[#allocation5 + $0xb70] sm:$0xf]
    %v2046 = vld [vmem:[#allocation5 + $0xb80] sm:$0xf]
    %v2047 = vld [vmem:[#allocation5 + $0xb90] sm:$0xf]
    %v2048 = vld [vmem:[#allocation5 + $0xba0] sm:$0xf]
    %v2049 = vld [vmem:[#allocation5 + $0xbb0] sm:$0xf]
    %v2050 = vld [vmem:[#allocation5 + $0xbc0] sm:$0xf]
    %v2051 = vld [vmem:[#allocation5 + $0xbd0] sm:$0xf]
    %v2052 = vld [vmem:[#allocation5 + $0xbe0] sm:$0xf]
    %v2053 = vld [vmem:[#allocation5 + $0xbf0] sm:$0xf]
    %v2054 = vld [vmem:[#allocation5 + $0xc00] sm:$0xf]
    %v2055 = vld [vmem:[#allocation5 + $0xc10] sm:$0xf]
    %v2056 = vld [vmem:[#allocation5 + $0xc20] sm:$0x1]
    %v2057 = vunpack.c.l.bf16 %v2056
    %v2058 = vlaneseq
    %v2059 = vshrl.u32 %v2058, 7
    %v2060 = vsub.s32 0, %v2059
    %v2061 = vrot.slane %v2057, %v2060
    %v2126 = vunpack.c.l.b16 %v1992
    %v2127 = vunpack.c.l.b16 %v1993
    %v2128 = vunpack.c.l.b16 %v1994
    %v2129 = vunpack.c.l.b16 %v1995
    %v2130 = vunpack.c.l.b16 %v1996
    %v2131 = vunpack.c.l.b16 %v1997
    %v2132 = vunpack.c.l.b16 %v1998
    %v2133 = vunpack.c.l.b16 %v1999
    %v2134 = vunpack.c.l.b16 %v2000
    %v2135 = vunpack.c.l.b16 %v2001
    %v2136 = vunpack.c.l.b16 %v2002
    %v2137 = vunpack.c.l.b16 %v2003
    %v2138 = vunpack.c.l.b16 %v2004
    %v2139 = vunpack.c.l.b16 %v2005
    %v2140 = vunpack.c.l.b16 %v2006
    %v2141 = vunpack.c.l.b16 %v2007
    %v2142 = vunpack.c.l.b16 %v2008
    %v2143 = vunpack.c.l.b16 %v2009
    %v2144 = vunpack.c.l.b16 %v2010
    %v2145 = vunpack.c.l.b16 %v2011
    %v2146 = vunpack.c.l.b16 %v2012
    %v2147 = vunpack.c.l.b16 %v2013
    %v2148 = vunpack.c.l.b16 %v2014
    %v2149 = vunpack.c.l.b16 %v2015
    %v2150 = vunpack.c.l.b16 %v2016
    %v2151 = vunpack.c.l.b16 %v2017
    %v2152 = vunpack.c.l.b16 %v2018
    %v2153 = vunpack.c.l.b16 %v2019
    %v2154 = vunpack.c.l.b16 %v2020
    %v2155 = vunpack.c.l.b16 %v2021
    %v2156 = vunpack.c.l.b16 %v2022
    %v2157 = vunpack.c.l.b16 %v2023
    %v2158 = vunpack.c.l.b16 %v2024
    %v2159 = vunpack.c.l.b16 %v2025
    %v2160 = vunpack.c.l.b16 %v2026
    %v2161 = vunpack.c.l.b16 %v2027
    %v2162 = vunpack.c.l.b16 %v2028
    %v2163 = vunpack.c.l.b16 %v2029
    %v2164 = vunpack.c.l.b16 %v2030
    %v2165 = vunpack.c.l.b16 %v2031
    %v2166 = vunpack.c.l.b16 %v2032
    %v2167 = vunpack.c.l.b16 %v2033
    %v2168 = vunpack.c.l.b16 %v2034
    %v2169 = vunpack.c.l.b16 %v2035
    %v2170 = vunpack.c.l.b16 %v2036
    %v2171 = vunpack.c.l.b16 %v2037
    %v2172 = vunpack.c.l.b16 %v2038
    %v2173 = vunpack.c.l.b16 %v2039
    %v2174 = vunpack.c.l.b16 %v2040
    %v2175 = vunpack.c.l.b16 %v2041
    %v2176 = vunpack.c.l.b16 %v2042
    %v2177 = vunpack.c.l.b16 %v2043
    %v2178 = vunpack.c.l.b16 %v2044
    %v2179 = vunpack.c.l.b16 %v2045
    %v2180 = vunpack.c.l.b16 %v2046
    %v2181 = vunpack.c.l.b16 %v2047
    %v2182 = vunpack.c.l.b16 %v2048
    %v2183 = vunpack.c.l.b16 %v2049
    %v2184 = vunpack.c.l.b16 %v2050
    %v2185 = vunpack.c.l.b16 %v2051
    %v2186 = vunpack.c.l.b16 %v2052
    %v2187 = vunpack.c.l.b16 %v2053
    %v2188 = vunpack.c.l.b16 %v2054
    %v2189 = vunpack.c.l.b16 %v2055
    %v2190 = vpack.c.b16 %v2127, %v2126
    %v2191 = vpack.c.b16 %v2129, %v2128
    %v2192 = vpack.c.b16 %v2131, %v2130
    %v2193 = vpack.c.b16 %v2133, %v2132
    %v2194 = vpack.c.b16 %v2135, %v2134
    %v2195 = vpack.c.b16 %v2137, %v2136
    %v2196 = vpack.c.b16 %v2139, %v2138
    %v2197 = vpack.c.b16 %v2141, %v2140
    %v2198 = vpack.c.b16 %v2143, %v2142
    %v2199 = vpack.c.b16 %v2145, %v2144
    %v2200 = vpack.c.b16 %v2147, %v2146
    %v2201 = vpack.c.b16 %v2149, %v2148
    %v2202 = vpack.c.b16 %v2151, %v2150
    %v2203 = vpack.c.b16 %v2153, %v2152
    %v2204 = vpack.c.b16 %v2155, %v2154
    %v2205 = vpack.c.b16 %v2157, %v2156
    %v2206 = vpack.c.b16 %v2159, %v2158
    %v2207 = vpack.c.b16 %v2161, %v2160
    %v2208 = vpack.c.b16 %v2163, %v2162
    %v2209 = vpack.c.b16 %v2165, %v2164
    %v2210 = vpack.c.b16 %v2167, %v2166
    %v2211 = vpack.c.b16 %v2169, %v2168
    %v2212 = vpack.c.b16 %v2171, %v2170
    %v2213 = vpack.c.b16 %v2173, %v2172
    %v2214 = vpack.c.b16 %v2175, %v2174
    %v2215 = vpack.c.b16 %v2177, %v2176
    %v2216 = vpack.c.b16 %v2179, %v2178
    %v2217 = vpack.c.b16 %v2181, %v2180
    %v2218 = vpack.c.b16 %v2183, %v2182
    %v2219 = vpack.c.b16 %v2185, %v2184
    %v2220 = vpack.c.b16 %v2187, %v2186
    %v2221 = vpack.c.b16 %v2189, %v2188
    %2254 = vmatprep.subr.bf16.mxu0 0
    %2255 = vmatpush1.bf16.msra.mxu0 %v2190
    %2256 = vmatprep.subr.bf16.mxu0 0
    %2257 = vmatpush1.bf16.msra.mxu0 %v2191
    %2258 = vmatprep.subr.bf16.mxu0 0
    %2259 = vmatpush1.bf16.msra.mxu0 %v2192
    %2260 = vmatprep.subr.bf16.mxu0 0
    %2261 = vmatpush1.bf16.msra.mxu0 %v2193
    %2262 = vmatprep.subr.bf16.mxu0 0
    %2263 = vmatpush1.bf16.msra.mxu0 %v2194
    %2264 = vmatprep.subr.bf16.mxu0 0
    %2265 = vmatpush1.bf16.msra.mxu0 %v2195
    %2266 = vmatprep.subr.bf16.mxu0 0
    %2267 = vmatpush1.bf16.msra.mxu0 %v2196
    %2268 = vmatprep.subr.bf16.mxu0 0
    %2269 = vmatpush1.bf16.msra.mxu0 %v2197
    %2270 = vmatprep.subr.bf16.mxu0 0
    %2271 = vmatpush1.bf16.msra.mxu0 %v2198
    %2272 = vmatprep.subr.bf16.mxu0 0
    %2273 = vmatpush1.bf16.msra.mxu0 %v2199
    %2274 = vmatprep.subr.bf16.mxu0 0
    %2275 = vmatpush1.bf16.msra.mxu0 %v2200
    %2276 = vmatprep.subr.bf16.mxu0 0
    %2277 = vmatpush1.bf16.msra.mxu0 %v2201
    %2278 = vmatprep.subr.bf16.mxu0 0
    %2279 = vmatpush1.bf16.msra.mxu0 %v2202
    %2280 = vmatprep.subr.bf16.mxu0 0
    %2281 = vmatpush1.bf16.msra.mxu0 %v2203
    %2282 = vmatprep.subr.bf16.mxu0 0
    %2283 = vmatpush1.bf16.msra.mxu0 %v2204
    %2284 = vmatprep.subr.bf16.mxu0 0
    %2285 = vmatpush1.bf16.msra.mxu0 %v2205
    %2286 = vmatprep.mubr.bf16.mxu0 %v1989
    %2287 = vmatmul.mubr.bf16.gmra.mrb[0].mxu0 %v1988
    %v2288 = vpop.f32.mrb[0].mxu0
    %v2289 = vadd.f32 %v2061, %v2288
    %v2290 = vpop.f32.mrb[0].mxu0
    %v2291 = vpop.f32.mrb[0].mxu0
    %v2292 = vpop.f32.mrb[0].mxu0
    %2293 = vdwg.mxu0
    %2294 = vmatprep.subr.bf16.mxu0 0
    %2295 = vmatpush1.bf16.msra.mxu0 %v2206
    %2296 = vmatprep.subr.bf16.mxu0 0
    %2297 = vmatpush1.bf16.msra.mxu0 %v2207
    %2298 = vmatprep.subr.bf16.mxu0 0
    %2299 = vmatpush1.bf16.msra.mxu0 %v2208
    %2300 = vmatprep.subr.bf16.mxu0 0
    %2301 = vmatpush1.bf16.msra.mxu0 %v2209
    %2302 = vmatprep.subr.bf16.mxu0 0
    %2303 = vmatpush1.bf16.msra.mxu0 %v2210
    %2304 = vmatprep.subr.bf16.mxu0 0
    %2305 = vmatpush1.bf16.msra.mxu0 %v2211
    %2306 = vmatprep.subr.bf16.mxu0 0
    %2307 = vmatpush1.bf16.msra.mxu0 %v2212
    %2308 = vmatprep.subr.bf16.mxu0 0
    %2309 = vmatpush1.bf16.msra.mxu0 %v2213
    %2310 = vmatprep.subr.bf16.mxu0 0
    %2311 = vmatpush1.bf16.msra.mxu0 %v2214
    %2312 = vmatprep.subr.bf16.mxu0 0
    %2313 = vmatpush1.bf16.msra.mxu0 %v2215
    %2314 = vmatprep.subr.bf16.mxu0 0
    %2315 = vmatpush1.bf16.msra.mxu0 %v2216
    %2316 = vmatprep.subr.bf16.mxu0 0
    %2317 = vmatpush1.bf16.msra.mxu0 %v2217
    %2318 = vmatprep.subr.bf16.mxu0 0
    %2319 = vmatpush1.bf16.msra.mxu0 %v2218
    %2320 = vmatprep.subr.bf16.mxu0 0
    %2321 = vmatpush1.bf16.msra.mxu0 %v2219
    %2322 = vmatprep.subr.bf16.mxu0 0
    %2323 = vmatpush1.bf16.msra.mxu0 %v2220
    %2324 = vmatprep.subr.bf16.mxu0 0
    %2325 = vmatpush1.bf16.msra.mxu0 %v2221
    %2326 = vmatprep.mubr.bf16.mxu0 %v1991
    %2327 = vmatmul.mubr.bf16.gmra.mrb[0].mxu0 %v1990
    %v2328 = vpop.f32.mrb[0].mxu0
    %v2329 = vadd.f32 %v2289, %v2328
    %v2330 = vpop.f32.mrb[0].mxu0
    %v2331 = vpop.f32.mrb[0].mxu0
    %v2332 = vpop.f32.mrb[0].mxu0
    %2333 = vdwg.mxu0
    %v2334 = vmax.f32 %v2329, 0.0
    %v2335 = vpack.c.bf16 %v2334, %v2334
    %v2336 = vld [vmem:[#allocation5 + $0xc40] sm:$0xf]
    %v2337 = vld [vmem:[#allocation5 + $0xc50] sm:$0xf]
    %v2338 = vld [vmem:[#allocation5 + $0xc60] sm:$0xf]
    %v2339 = vld [vmem:[#allocation5 + $0xc70] sm:$0xf]
    %v2340 = vld [vmem:[#allocation5 + $0xc80] sm:$0x1]
    %v2341 = vunpack.c.l.bf16 %v2340
    %v2342 = vlaneseq
    %v2343 = vshrl.u32 %v2342, 7
    %v2344 = vsub.s32 0, %v2343
    %v2345 = vrot.slane %v2341, %v2344
    %v2350 = vunpack.c.l.b16 %v2336
    %v2351 = vunpack.c.l.b16 %v2337
    %v2352 = vunpack.c.l.b16 %v2338
    %v2353 = vunpack.c.l.b16 %v2339
    %v2354 = vpack.c.b16 %v2351, %v2350
    %v2355 = vpack.c.b16 %v2353, %v2352
    %vm2358 = vcmask 261120
    %v2360 = vsel %vm2358, %v2335, 0
    %2362 = vmatprep.subr.bf16.mxu0 0
    %2363 = vmatpush1.bf16.msra.mxu0 %v2354
    %2364 = vmatprep.subr.bf16.mxu0 0
    %2365 = vmatpush1.bf16.msra.mxu0 %v2355
    %2366 = vmatprep.subr.bf16.mxu0 0
    %2367 = vmatpush1.bf16.msra.mxu0 0
    %2368 = vmatprep.subr.bf16.mxu0 0
    %2369 = vmatpush1.bf16.msra.mxu0 0
    %2370 = vmatprep.subr.bf16.mxu0 0
    %2371 = vmatpush1.bf16.msra.mxu0 0
    %2372 = vmatprep.subr.bf16.mxu0 0
    %2373 = vmatpush1.bf16.msra.mxu0 0
    %2374 = vmatprep.subr.bf16.mxu0 0
    %2375 = vmatpush1.bf16.msra.mxu0 0
    %2376 = vmatprep.subr.bf16.mxu0 0
    %2377 = vmatpush1.bf16.msra.mxu0 0
    %2378 = vmatprep.subr.bf16.mxu0 0
    %2379 = vmatpush1.bf16.msra.mxu0 0
    %2380 = vmatprep.subr.bf16.mxu0 0
    %2381 = vmatpush1.bf16.msra.mxu0 0
    %2382 = vmatprep.subr.bf16.mxu0 0
    %2383 = vmatpush1.bf16.msra.mxu0 0
    %2384 = vmatprep.subr.bf16.mxu0 0
    %2385 = vmatpush1.bf16.msra.mxu0 0
    %2386 = vmatprep.subr.bf16.mxu0 0
    %2387 = vmatpush1.bf16.msra.mxu0 0
    %2388 = vmatprep.subr.bf16.mxu0 0
    %2389 = vmatpush1.bf16.msra.mxu0 0
    %2390 = vmatprep.subr.bf16.mxu0 0
    %2391 = vmatpush1.bf16.msra.mxu0 0
    %2392 = vmatprep.subr.bf16.mxu0 0
    %2393 = vmatpush1.bf16.msra.mxu0 0
    %2394 = vmatprep.mubr.bf16.mxu0 0
    %2395 = vmatmul.mubr.bf16.gmra.mrb[0].mxu0 %v2360
    %v2396 = vpop.f32.mrb[0].mxu0
    %v2397 = vadd.f32 %v2345, %v2396
    %v2398 = vpop.f32.mrb[0].mxu0
    %v2399 = vpop.f32.mrb[0].mxu0
    %v2400 = vpop.f32.mrb[0].mxu0
    %2401 = vdwg.mxu0
    %v2402 = vmax.f32 %v2397, 0.0
    %v2403 = vpack.c.bf16 %v2402, %v2402
    %v2404 = vld [vmem:[#allocation5 + $0xca0] sm:$0xf]
    %v2405 = vld [vmem:[#allocation5 + $0xcb0] sm:$0xf]
    %v2406 = vld [vmem:[#allocation5 + $0xcc0] sm:$0xf]
    %v2407 = vld [vmem:[#allocation5 + $0xcd0] sm:$0xf]
    %v2408 = vld [vmem:[#allocation5 + $0xce0] sm:$0x1]
    %v2409 = vunpack.c.l.bf16 %v2408
    %v2410 = vlaneseq
    %v2411 = vshrl.u32 %v2410, 7
    %v2412 = vsub.s32 0, %v2411
    %v2413 = vrot.slane %v2409, %v2412
    %v2418 = vunpack.c.l.b16 %v2404
    %v2419 = vunpack.c.l.b16 %v2405
    %v2420 = vunpack.c.l.b16 %v2406
    %v2421 = vunpack.c.l.b16 %v2407
    %v2422 = vpack.c.b16 %v2419, %v2418
    %v2423 = vpack.c.b16 %v2421, %v2420
    %v2427 = vsel %vm2358, %v2403, 0
    %2429 = vmatprep.subr.bf16.mxu0 0
    %2430 = vmatpush1.bf16.msra.mxu0 %v2422
    %2431 = vmatprep.subr.bf16.mxu0 0
    %2432 = vmatpush1.bf16.msra.mxu0 %v2423
    %2433 = vmatprep.subr.bf16.mxu0 0
    %2434 = vmatpush1.bf16.msra.mxu0 0
    %2435 = vmatprep.subr.bf16.mxu0 0
    %2436 = vmatpush1.bf16.msra.mxu0 0
    %2437 = vmatprep.subr.bf16.mxu0 0
    %2438 = vmatpush1.bf16.msra.mxu0 0
    %2439 = vmatprep.subr.bf16.mxu0 0
    %2440 = vmatpush1.bf16.msra.mxu0 0
    %2441 = vmatprep.subr.bf16.mxu0 0
    %2442 = vmatpush1.bf16.msra.mxu0 0
    %2443 = vmatprep.subr.bf16.mxu0 0
    %2444 = vmatpush1.bf16.msra.mxu0 0
    %2445 = vmatprep.subr.bf16.mxu0 0
    %2446 = vmatpush1.bf16.msra.mxu0 0
    %2447 = vmatprep.subr.bf16.mxu0 0
    %2448 = vmatpush1.bf16.msra.mxu0 0
    %2449 = vmatprep.subr.bf16.mxu0 0
    %2450 = vmatpush1.bf16.msra.mxu0 0
    %2451 = vmatprep.subr.bf16.mxu0 0
    %2452 = vmatpush1.bf16.msra.mxu0 0
    %2453 = vmatprep.subr.bf16.mxu0 0
    %2454 = vmatpush1.bf16.msra.mxu0 0
    %2455 = vmatprep.subr.bf16.mxu0 0
    %2456 = vmatpush1.bf16.msra.mxu0 0
    %2457 = vmatprep.subr.bf16.mxu0 0
    %2458 = vmatpush1.bf16.msra.mxu0 0
    %2459 = vmatprep.subr.bf16.mxu0 0
    %2460 = vmatpush1.bf16.msra.mxu0 0
    %2461 = vmatprep.mubr.bf16.mxu0 0
    %2462 = vmatmul.mubr.bf16.gmra.mrb[0].mxu0 %v2427
    %v2463 = vpop.f32.mrb[0].mxu0
    %v2464 = vadd.f32 %v2413, %v2463
    %v2465 = vpop.f32.mrb[0].mxu0
    %v2466 = vpop.f32.mrb[0].mxu0
    %v2467 = vpop.f32.mrb[0].mxu0
    %2468 = vdwg.mxu0
    %v2469 = vlaneseq
    %v2470 = vand.u32 %v2469, 127
    %vm2471 = vcmp.lt.s32.totalorder %v2470, 4
    %v2472 = vtanh.pop %v2464
    %v2473 = vsel %vm2471, %v2472, %v2464
    %vm2474 = vcmask 58368
    %2475 = vst.msk [vmem:[#allocation7] sm:$0x3] %vm2474, %v2473
    // Predicated region
    $region18: #{tpu_custom_call.1} parent=1 // pred_check
      _
    $region19: #{tpu_custom_call.1} parent=1 // pred_check_branch
      %2477 = sbr.rel (0) target = $region21
    $region20: #{tpu_custom_call.1} parent=1 // pred_region
      %s2479 = ssub.s32 32, 32
      %2480 = vsyncadd [#allocation4], %s2479
      %s2482 = sshll.u32 [#allocation7], 4
      %s2483 = int_to_ptr.vmem [resolvable:$true] %s2482
      %2485 = dma.vmem_to_hbm [thread:$0]  %s2483, 32, %s2, [#allocation4]
    $region21: #{tpu_custom_call.1} parent=1 // pred_fallthru
      _
    // Predicated region
    $region22: #{tpu_custom_call.1} parent=1 // pred_check
      _
    $region23: #{tpu_custom_call.1} parent=1 // pred_check_branch
      %2487 = sbr.rel (0) target = $region25
    $region24: #{tpu_custom_call.1} parent=1 // pred_region
      %2488 = dma.done [#allocation4], 32
    $region25: #{tpu_custom_call.1} parent=1 // pred_fallthru
      _
    %2489 = vsyncpa [#allocation3], 1
    %2490 = vsyncpa [#allocation6], 1
    %2491 = vsyncpa [#allocation4], 1

</llo_original>
